<compile_context>
chip_gen: v7x
topology: tpu7x:2x2x1
jax: 0.10.0
libtpu: 0.0.40
codegen_flags: <defaults>
</compile_context>

<pallas_src>
import numpy as np
import jax
import jax.numpy as jnp
from jax.experimental import pallas as pl
from jax.experimental.pallas import tpu as pltpu


def make_mha_kernel(n_head, d_k, d_v, scale, eps=1e-5):
    def kernel(q_ref, k_ref, v_ref, wq_ref, wk_ref, wv_ref, wfc_ref,
               bfc_ref, gamma_ref, beta_ref, out_ref,
               qp_scr, m_scr, l_scr, acc_scr):
        j = pl.program_id(1)
        cdt = q_ref.dtype          # MXU operand dtype (bf16 stays bf16, f32 stays f32)

        # ---- once per q tile (first k tile): fused Q projection + state init ----
        @pl.when(j == 0)
        def _init():
            qp = jnp.dot(q_ref[...], wq_ref[...],
                         preferred_element_type=jnp.float32) * scale   # (tq, H*dk)
            qp_scr[...] = qp.astype(qp_scr.dtype)
            m_scr[...] = jnp.full(m_scr.shape, -jnp.inf, dtype=m_scr.dtype)
            l_scr[...] = jnp.zeros(l_scr.shape, dtype=l_scr.dtype)
            acc_scr[...] = jnp.zeros(acc_scr.shape, dtype=acc_scr.dtype)

        # ---- fused K/V projections for this k tile (all heads at once) ----
        kp = jnp.dot(k_ref[...], wk_ref[...],
                     preferred_element_type=jnp.float32).astype(cdt)   # (tk, H*dk)
        vp = jnp.dot(v_ref[...], wv_ref[...],
                     preferred_element_type=jnp.float32).astype(cdt)   # (tk, H*dv)
        qp = qp_scr[...]                                               # (tq, H*dk)

        # ---- per-head online softmax (n_head is a small static int) ----
        for h in range(n_head):
            qh = qp[:, h * d_k:(h + 1) * d_k]                          # (tq, dk)
            kh = kp[:, h * d_k:(h + 1) * d_k]                          # (tk, dk)
            vh = vp[:, h * d_v:(h + 1) * d_v]                          # (tk, dv)
            # scores: contract last dims of both (NT matmul on the MXU), f32 acc
            s = jax.lax.dot_general(qh, kh, (((1,), (1,)), ((), ())),
                                    preferred_element_type=jnp.float32)  # (tq, tk)
            m_prev = m_scr[h]                                          # (tq, 1)
            m_new = jnp.maximum(m_prev, jnp.max(s, axis=-1, keepdims=True))
            alpha = jnp.exp(m_prev - m_new)
            p = jnp.exp(s - m_new)                                     # unnormalized probs
            l_scr[h] = alpha * l_scr[h] + jnp.sum(p, axis=-1, keepdims=True)
            acc_scr[h] = alpha * acc_scr[h] + jnp.dot(
                p.astype(cdt), vh, preferred_element_type=jnp.float32)
            m_scr[h] = m_new

        # ---- finalize on the last k tile: normalize, fc, residual, LayerNorm ----
        @pl.when(j == pl.num_programs(1) - 1)
        def _finalize():
            y = jnp.zeros(out_ref.shape, jnp.float32)
            for h in range(n_head):
                inv_l = pl.reciprocal(l_scr[h], approx=False)          # (tq, 1)
                oh = (acc_scr[h] * inv_l).astype(cdt)                  # (tq, dv)
                y = y + jnp.dot(oh, wfc_ref[h * d_v:(h + 1) * d_v, :],
                                preferred_element_type=jnp.float32)
            # fc bias added once here (not broadcast into the accumulator)
            x = y + bfc_ref[...] + q_ref[...].astype(jnp.float32)      # residual = q
            mean = jnp.mean(x, axis=-1, keepdims=True)
            var = jnp.mean((x - mean) ** 2, axis=-1, keepdims=True)
            xn = (x - mean) * jax.lax.rsqrt(var + eps)
            out_ref[...] = (xn * gamma_ref[...] + beta_ref[...]).astype(out_ref.dtype)

    return kernel


def _pick_tile(n, target):
    """Largest tile <= target that evenly divides n (falls back to n)."""
    if n <= target:
        return n
    for t in range(target, 0, -1):
        if n % t == 0:
            return t
    return n


def multi_head_attention(q, k, v, params, n_head, d_k, d_v, *,
                         block_q=256, block_k=512):
    Lq, d_model = q.shape
    Lk, Lv = k.shape[0], v.shape[0]
    assert Lk == Lv, "key/value lengths must match"

    # Pre-transpose weights (one-time, host side) so in-kernel matmuls contract
    # along the last dim without .T.
    wq = params["w_qs"].T                       # (d_model, n_head*d_k)
    wk = params["w_ks"].T                       # (d_model, n_head*d_k)
    wv = params["w_vs"].T                       # (d_model, n_head*d_v)
    wfc = params["fc_w"].T                      # (n_head*d_v, d_model)
    bfc = params["fc_b"].reshape(1, d_model)
    gamma = params["ln_g"].reshape(1, d_model)
    beta = params["ln_b"].reshape(1, d_model)

    tq = _pick_tile(Lq, block_q)
    tk = _pick_tile(Lk, block_k)
    grid = (Lq // tq, Lk // tk)

    scale = float(1.0 / np.power(d_k, 0.5))     # folded into the Q projection
    kernel = make_mha_kernel(n_head, d_k, d_v, scale)

    grid_spec = pltpu.PrefetchScalarGridSpec(
        num_scalar_prefetch=0,
        grid=grid,
        in_specs=[
            pl.BlockSpec((tq, d_model), lambda i, j: (i, 0)),            # q tile
            pl.BlockSpec((tk, d_model), lambda i, j: (j, 0)),            # k tile
            pl.BlockSpec((tk, d_model), lambda i, j: (j, 0)),            # v tile
            pl.BlockSpec((d_model, n_head * d_k), lambda i, j: (0, 0)),  # Wq
            pl.BlockSpec((d_model, n_head * d_k), lambda i, j: (0, 0)),  # Wk
            pl.BlockSpec((d_model, n_head * d_v), lambda i, j: (0, 0)),  # Wv
            pl.BlockSpec((n_head * d_v, d_model), lambda i, j: (0, 0)),  # Wfc
            pl.BlockSpec((1, d_model), lambda i, j: (0, 0)),             # fc bias
            pl.BlockSpec((1, d_model), lambda i, j: (0, 0)),             # ln gamma
            pl.BlockSpec((1, d_model), lambda i, j: (0, 0)),             # ln beta
        ],
        out_specs=pl.BlockSpec((tq, d_model), lambda i, j: (i, 0)),
        scratch_shapes=[
            pltpu.VMEM((tq, n_head * d_k), q.dtype),      # cached Q projection
            pltpu.VMEM((n_head, tq, 1), jnp.float32),     # running max
            pltpu.VMEM((n_head, tq, 1), jnp.float32),     # running sum
            pltpu.VMEM((n_head, tq, d_v), jnp.float32),   # unnormalized PV accumulator
        ],
    )

    # Advisory cost estimate (K/V projections are recomputed once per q tile).
    n_qt = grid[0]
    flops = 2.0 * (Lq * d_model * n_head * d_k
                   + n_qt * Lk * d_model * n_head * (d_k + d_v)
                   + n_head * Lq * Lk * (d_k + d_v)
                   + Lq * n_head * d_v * d_model)
    itemsize = jnp.dtype(q.dtype).itemsize
    w_bytes = 4 * (wq.size + wk.size + wv.size + wfc.size + 3 * d_model)
    io_bytes = itemsize * (q.size + n_qt * (k.size + v.size) + Lq * d_model)
    cost = pl.CostEstimate(flops=int(flops),
                           transcendentals=int(n_head * Lq * Lk),
                           bytes_accessed=int(w_bytes + io_bytes))

    return pl.pallas_call(
        kernel,
        out_shape=jax.ShapeDtypeStruct((Lq, d_model), q.dtype),
        grid_spec=grid_spec,
        compiler_params=pltpu.CompilerParams(
            # q-tile axis parallel (megacore / v7x dual-TC), k-tile axis is the
            # sequential online-softmax reduction.
            dimension_semantics=("parallel", "arbitrary"),
            # Tiles (tq<=256, tk<=512) sized to fit v7x's 64 MiB VMEM with headroom.
            vmem_limit_bytes=48 * 1024 * 1024,
        ),
        cost_estimate=cost,
    )(q, k, v, wq, wk, wv, wfc, bfc, gamma, beta)


def reference_mha(q, k, v, params, n_head, d_k, d_v):
    """Pure-JAX reference mirroring the PyTorch forward (eval mode)."""
    Lq, d_model = q.shape
    Lk, Lv = k.shape[0], v.shape[0]
    residual = q
    qh = (q @ params["w_qs"].T).reshape(Lq, n_head, d_k).transpose(1, 0, 2)
    kh = (k @ params["w_ks"].T).reshape(Lk, n_head, d_k).transpose(1, 0, 2)
    vh = (v @ params["w_vs"].T).reshape(Lv, n_head, d_v).transpose(1, 0, 2)
    attn = jnp.einsum("hqd,hkd->hqk", qh, kh) / np.power(d_k, 0.5)
    attn = jax.nn.softmax(attn, axis=2)
    out = jnp.einsum("hqk,hkd->hqd", attn, vh)
    out = out.transpose(1, 0, 2).reshape(Lq, n_head * d_v)
    out = out @ params["fc_w"].T + params["fc_b"]
    x = out + residual
    mean = jnp.mean(x, axis=-1, keepdims=True)
    var = jnp.mean((x - mean) ** 2, axis=-1, keepdims=True)
    y = (x - mean) / jnp.sqrt(var + 1e-5)
    return y * params["ln_g"] + params["ln_b"]


def init_params(key, n_head, d_model, d_k, d_v):
    ks = jax.random.split(key, 5)
    std_qk = np.sqrt(2.0 / (d_model + d_k))
    std_v = np.sqrt(2.0 / (d_model + d_v))
    fan_in, fan_out = n_head * d_v, d_model
    std_fc = np.sqrt(2.0 / (fan_in + fan_out))          # xavier_normal
    bound = 1.0 / np.sqrt(fan_in)                       # default Linear bias init
    return {
        "w_qs": jax.random.normal(ks[0], (n_head * d_k, d_model), jnp.float32) * std_qk,
        "w_ks": jax.random.normal(ks[1], (n_head * d_k, d_model), jnp.float32) * std_qk,
        "w_vs": jax.random.normal(ks[2], (n_head * d_v, d_model), jnp.float32) * std_v,
        "fc_w": jax.random.normal(ks[3], (d_model, n_head * d_v), jnp.float32) * std_fc,
        "fc_b": jax.random.uniform(ks[4], (d_model,), jnp.float32, -bound, bound),
        "ln_g": jnp.ones((d_model,), jnp.float32),
        "ln_b": jnp.zeros((d_model,), jnp.float32),
    }


if __name__ == "__main__":
    n_head, d_model, d_k, d_v = 2, 32, 16, 16
    Lq, Lk, Lv = 64, 96, 96          # small but multi-tile (grid = (2, 3) below)

    key = jax.random.PRNGKey(0)
    kq, kk, kv, kp = jax.random.split(key, 4)
    q = jax.random.normal(kq, (Lq, d_model), jnp.float32)
    k = jax.random.normal(kk, (Lk, d_model), jnp.float32)
    v = jax.random.normal(kv, (Lv, d_model), jnp.float32)
    params = init_params(kp, n_head, d_model, d_k, d_v)

    # Small block sizes force a (2, 3) grid to exercise the parallel q-tile axis,
    # the online-softmax k-tile reduction, and the init/finalize paths.
    out = multi_head_attention(q, k, v, params, n_head, d_k, d_v,
                               block_q=32, block_k=32)
    out = jax.block_until_ready(out)

    ref = reference_mha(q, k, v, params, n_head, d_k, d_v)
    np.testing.assert_allclose(np.asarray(out), np.asarray(ref), rtol=1e-4, atol=1e-4)

    print("KERNEL_OK")
</pallas_src>

<mosaic_0001>
module attributes {stable_mosaic.version = 11 : i64} {
  func.func @kernel(%arg0: i32, %arg1: i32, %arg2: memref<32x32xf32, #tpu.memory_space<vmem>>, %arg3: memref<32x32xf32, #tpu.memory_space<vmem>>, %arg4: memref<32x32xf32, #tpu.memory_space<vmem>>, %arg5: memref<32x32xf32, #tpu.memory_space<vmem>>, %arg6: memref<32x32xf32, #tpu.memory_space<vmem>>, %arg7: memref<32x32xf32, #tpu.memory_space<vmem>>, %arg8: memref<32x32xf32, #tpu.memory_space<vmem>>, %arg9: memref<1x32xf32, #tpu.memory_space<vmem>>, %arg10: memref<1x32xf32, #tpu.memory_space<vmem>>, %arg11: memref<1x32xf32, #tpu.memory_space<vmem>>, %arg12: memref<32x32xf32, #tpu.memory_space<vmem>>, %arg13: memref<32x32xf32, #tpu.memory_space<vmem>>, %arg14: memref<2x32x1xf32, #tpu.memory_space<vmem>>, %arg15: memref<2x32x1xf32, #tpu.memory_space<vmem>>, %arg16: memref<2x32x16xf32, #tpu.memory_space<vmem>>) attributes {dimension_semantics = [#tpu.dimension_semantics<parallel>, #tpu.dimension_semantics<arbitrary>], iteration_bounds = array<i64: 2, 3>, scalar_prefetch = 0 : i64, scratch_operands = 4 : i64, tpu.core_type = #tpu.core_type<tc>, window_params = [{transform_indices = @transform_0, window_bounds = array<i64: 32, 32>}, {transform_indices = @transform_1, window_bounds = array<i64: 32, 32>}, {transform_indices = @transform_2, window_bounds = array<i64: 32, 32>}, {pipeline_mode = #tpu.pipeline_mode<synchronous>, transform_indices = @transform_3, window_bounds = array<i64: 32, 32>}, {pipeline_mode = #tpu.pipeline_mode<synchronous>, transform_indices = @transform_4, window_bounds = array<i64: 32, 32>}, {pipeline_mode = #tpu.pipeline_mode<synchronous>, transform_indices = @transform_5, window_bounds = array<i64: 32, 32>}, {pipeline_mode = #tpu.pipeline_mode<synchronous>, transform_indices = @transform_6, window_bounds = array<i64: 32, 32>}, {pipeline_mode = #tpu.pipeline_mode<synchronous>, transform_indices = @transform_7, window_bounds = array<i64: 1, 32>}, {pipeline_mode = #tpu.pipeline_mode<synchronous>, transform_indices = @transform_8, window_bounds = array<i64: 1, 32>}, {pipeline_mode = #tpu.pipeline_mode<synchronous>, transform_indices = @transform_9, window_bounds = array<i64: 1, 32>}, {transform_indices = @transform_10, window_bounds = array<i64: 32, 32>}]} {
    %c0_i32 = arith.constant 0 : i32
    %0 = arith.cmpi eq, %arg1, %c0_i32 : i32
    %1 = arith.extui %0 : i1 to i32
    %c0_i32_0 = arith.constant 0 : i32
    %2 = arith.cmpi ne, %1, %c0_i32_0 : i32
    scf.if %2 {
      %c0_55 = arith.constant 0 : index
      %c0_56 = arith.constant 0 : index
      %83 = vector.load %arg2[%c0_55, %c0_56] : memref<32x32xf32, #tpu.memory_space<vmem>>, vector<32x32xf32>
      %c0_57 = arith.constant 0 : index
      %c0_58 = arith.constant 0 : index
      %84 = vector.load %arg5[%c0_57, %c0_58] : memref<32x32xf32, #tpu.memory_space<vmem>>, vector<32x32xf32>
      %cst_59 = arith.constant dense<0.000000e+00> : vector<32x32xf32>
      %85 = tpu.matmul %83, %84, %cst_59 {dimension_numbers = #tpu.dot_dimension_numbers<[1], [0], [0], [1], [0, 0, 1, 1], [], []>} : vector<32x32xf32>, vector<32x32xf32>, vector<32x32xf32> -> vector<32x32xf32>
      %cst_60 = arith.constant 2.500000e-01 : f32
      %86 = vector.broadcast %cst_60 : f32 to vector<32x32xf32>
      %87 = arith.mulf %85, %86 : vector<32x32xf32>
      %c0_61 = arith.constant 0 : index
      %c0_62 = arith.constant 0 : index
      %88 = vector.load %arg13[%c0_61, %c0_62] : memref<32x32xf32, #tpu.memory_space<vmem>>, vector<32x32xf32>
      tpu.vector_store %arg13[%c0_61, %c0_62], %87 {strides = array<i32>} : memref<32x32xf32, #tpu.memory_space<vmem>>, vector<32x32xf32>,
      %cst_63 = arith.constant 0xFF800000 : f32
      %89 = vector.broadcast %cst_63 : f32 to vector<2x32x1xf32>
      %c0_64 = arith.constant 0 : index
      %c0_65 = arith.constant 0 : index
      %c0_66 = arith.constant 0 : index
      %90 = vector.load %arg14[%c0_64, %c0_65, %c0_66] : memref<2x32x1xf32, #tpu.memory_space<vmem>>, vector<2x32x1xf32>
      tpu.vector_store %arg14[%c0_64, %c0_65, %c0_66], %89 {strides = array<i32>} : memref<2x32x1xf32, #tpu.memory_space<vmem>>, vector<2x32x1xf32>,
      %cst_67 = arith.constant 0.000000e+00 : f32
      %91 = vector.broadcast %cst_67 : f32 to vector<2x32x1xf32>
      %c0_68 = arith.constant 0 : index
      %c0_69 = arith.constant 0 : index
      %c0_70 = arith.constant 0 : index
      %92 = vector.load %arg15[%c0_68, %c0_69, %c0_70] : memref<2x32x1xf32, #tpu.memory_space<vmem>>, vector<2x32x1xf32>
      tpu.vector_store %arg15[%c0_68, %c0_69, %c0_70], %91 {strides = array<i32>} : memref<2x32x1xf32, #tpu.memory_space<vmem>>, vector<2x32x1xf32>,
      %cst_71 = arith.constant 0.000000e+00 : f32
      %93 = vector.broadcast %cst_71 : f32 to vector<2x32x16xf32>
      %c0_72 = arith.constant 0 : index
      %c0_73 = arith.constant 0 : index
      %c0_74 = arith.constant 0 : index
      %94 = vector.load %arg16[%c0_72, %c0_73, %c0_74] : memref<2x32x16xf32, #tpu.memory_space<vmem>>, vector<2x32x16xf32>
      tpu.vector_store %arg16[%c0_72, %c0_73, %c0_74], %93 {strides = array<i32>} : memref<2x32x16xf32, #tpu.memory_space<vmem>>, vector<2x32x16xf32>,
    } else {
    }
    %c0 = arith.constant 0 : index
    %c0_1 = arith.constant 0 : index
    %3 = vector.load %arg3[%c0, %c0_1] : memref<32x32xf32, #tpu.memory_space<vmem>>, vector<32x32xf32>
    %c0_2 = arith.constant 0 : index
    %c0_3 = arith.constant 0 : index
    %4 = vector.load %arg6[%c0_2, %c0_3] : memref<32x32xf32, #tpu.memory_space<vmem>>, vector<32x32xf32>
    %cst = arith.constant dense<0.000000e+00> : vector<32x32xf32>
    %5 = tpu.matmul %3, %4, %cst {dimension_numbers = #tpu.dot_dimension_numbers<[1], [0], [0], [1], [0, 0, 1, 1], [], []>} : vector<32x32xf32>, vector<32x32xf32>, vector<32x32xf32> -> vector<32x32xf32>
    %c0_4 = arith.constant 0 : index
    %c0_5 = arith.constant 0 : index
    %6 = vector.load %arg4[%c0_4, %c0_5] : memref<32x32xf32, #tpu.memory_space<vmem>>, vector<32x32xf32>
    %c0_6 = arith.constant 0 : index
    %c0_7 = arith.constant 0 : index
    %7 = vector.load %arg7[%c0_6, %c0_7] : memref<32x32xf32, #tpu.memory_space<vmem>>, vector<32x32xf32>
    %cst_8 = arith.constant dense<0.000000e+00> : vector<32x32xf32>
    %8 = tpu.matmul %6, %7, %cst_8 {dimension_numbers = #tpu.dot_dimension_numbers<[1], [0], [0], [1], [0, 0, 1, 1], [], []>} : vector<32x32xf32>, vector<32x32xf32>, vector<32x32xf32> -> vector<32x32xf32>
    %c0_9 = arith.constant 0 : index
    %c0_10 = arith.constant 0 : index
    %9 = vector.load %arg13[%c0_9, %c0_10] : memref<32x32xf32, #tpu.memory_space<vmem>>, vector<32x32xf32>
    %10 = vector.extract_strided_slice %9 {offsets = [0, 0], sizes = [32, 16], strides = [1, 1]} : vector<32x32xf32> to vector<32x16xf32>
    %11 = vector.extract_strided_slice %5 {offsets = [0, 0], sizes = [32, 16], strides = [1, 1]} : vector<32x32xf32> to vector<32x16xf32>
    %12 = vector.extract_strided_slice %8 {offsets = [0, 0], sizes = [32, 16], strides = [1, 1]} : vector<32x32xf32> to vector<32x16xf32>
    %cst_11 = arith.constant dense<0.000000e+00> : vector<32x32xf32>
    %13 = tpu.matmul %10, %11, %cst_11 {dimension_numbers = #tpu.dot_dimension_numbers<[1], [1], [0], [0], [0, 0, 1, 0], [], []>} : vector<32x16xf32>, vector<32x16xf32>, vector<32x32xf32> -> vector<32x32xf32>
    %c0_12 = arith.constant 0 : index
    %c0_13 = arith.constant 0 : index
    %c0_14 = arith.constant 0 : index
    %14 = vector.load %arg14[%c0_12, %c0_13, %c0_14] : memref<2x32x1xf32, #tpu.memory_space<vmem>>, vector<1x32x1xf32>
    %15 = vector.shape_cast %14 : vector<1x32x1xf32> to vector<32x1xf32>
    %cst_15 = arith.constant dense<0xFF800000> : vector<32xf32>
    %16 = vector.multi_reduction <maximumf>, %13, %cst_15 [1] : vector<32x32xf32> to vector<32xf32>
    %17 = vector.shape_cast %16 : vector<32xf32> to vector<32x1xf32>
    %18 = arith.maximumf %15, %17 : vector<32x1xf32>
    %19 = arith.subf %15, %18 : vector<32x1xf32>
    %20 = math.exp %19 : vector<32x1xf32>
    %21 = vector.broadcast %18 : vector<32x1xf32> to vector<32x32xf32>
    %22 = arith.subf %13, %21 : vector<32x32xf32>
    %23 = math.exp %22 : vector<32x32xf32>
    %c0_16 = arith.constant 0 : index
    %c0_17 = arith.constant 0 : index
    %c0_18 = arith.constant 0 : index
    %24 = vector.load %arg15[%c0_16, %c0_17, %c0_18] : memref<2x32x1xf32, #tpu.memory_space<vmem>>, vector<1x32x1xf32>
    %25 = vector.shape_cast %24 : vector<1x32x1xf32> to vector<32x1xf32>
    %26 = arith.mulf %20, %25 : vector<32x1xf32>
    %cst_19 = arith.constant dense<0.000000e+00> : vector<32xf32>
    %27 = vector.multi_reduction <add>, %23, %cst_19 [1] : vector<32x32xf32> to vector<32xf32>
    %28 = vector.shape_cast %27 : vector<32xf32> to vector<32x1xf32>
    %29 = arith.addf %26, %28 : vector<32x1xf32>
    %c0_20 = arith.constant 0 : index
    %c0_21 = arith.constant 0 : index
    %c0_22 = arith.constant 0 : index
    %30 = vector.load %arg15[%c0_20, %c0_21, %c0_22] : memref<2x32x1xf32, #tpu.memory_space<vmem>>, vector<1x32x1xf32>
    %31 = vector.shape_cast %30 : vector<1x32x1xf32> to vector<32x1xf32>
    %32 = vector.shape_cast %29 : vector<32x1xf32> to vector<1x32x1xf32>
    tpu.vector_store %arg15[%c0_20, %c0_21, %c0_22], %32 {strides = array<i32>} : memref<2x32x1xf32, #tpu.memory_space<vmem>>, vector<1x32x1xf32>,
    %c0_23 = arith.constant 0 : index
    %c0_24 = arith.constant 0 : index
    %c0_25 = arith.constant 0 : index
    %33 = vector.load %arg16[%c0_23, %c0_24, %c0_25] : memref<2x32x16xf32, #tpu.memory_space<vmem>>, vector<1x32x16xf32>
    %34 = vector.shape_cast %33 : vector<1x32x16xf32> to vector<32x16xf32>
    %35 = vector.broadcast %20 : vector<32x1xf32> to vector<32x16xf32>
    %36 = arith.mulf %35, %34 : vector<32x16xf32>
    %cst_26 = arith.constant dense<0.000000e+00> : vector<32x16xf32>
    %37 = tpu.matmul %23, %12, %cst_26 {dimension_numbers = #tpu.dot_dimension_numbers<[1], [0], [0], [1], [0, 0, 1, 1], [], []>} : vector<32x32xf32>, vector<32x16xf32>, vector<32x16xf32> -> vector<32x16xf32>
    %38 = arith.addf %36, %37 : vector<32x16xf32>
    %c0_27 = arith.constant 0 : index
    %c0_28 = arith.constant 0 : index
    %c0_29 = arith.constant 0 : index
    %39 = vector.load %arg16[%c0_27, %c0_28, %c0_29] : memref<2x32x16xf32, #tpu.memory_space<vmem>>, vector<1x32x16xf32>
    %40 = vector.shape_cast %39 : vector<1x32x16xf32> to vector<32x16xf32>
    %41 = vector.shape_cast %38 : vector<32x16xf32> to vector<1x32x16xf32>
    tpu.vector_store %arg16[%c0_27, %c0_28, %c0_29], %41 {strides = array<i32>} : memref<2x32x16xf32, #tpu.memory_space<vmem>>, vector<1x32x16xf32>,
    %c0_30 = arith.constant 0 : index
    %c0_31 = arith.constant 0 : index
    %c0_32 = arith.constant 0 : index
    %42 = vector.load %arg14[%c0_30, %c0_31, %c0_32] : memref<2x32x1xf32, #tpu.memory_space<vmem>>, vector<1x32x1xf32>
    %43 = vector.shape_cast %42 : vector<1x32x1xf32> to vector<32x1xf32>
    %44 = vector.shape_cast %18 : vector<32x1xf32> to vector<1x32x1xf32>
    tpu.vector_store %arg14[%c0_30, %c0_31, %c0_32], %44 {strides = array<i32>} : memref<2x32x1xf32, #tpu.memory_space<vmem>>, vector<1x32x1xf32>,
    %45 = vector.extract_strided_slice %9 {offsets = [0, 16], sizes = [32, 16], strides = [1, 1]} : vector<32x32xf32> to vector<32x16xf32>
    %46 = vector.extract_strided_slice %5 {offsets = [0, 16], sizes = [32, 16], strides = [1, 1]} : vector<32x32xf32> to vector<32x16xf32>
    %47 = vector.extract_strided_slice %8 {offsets = [0, 16], sizes = [32, 16], strides = [1, 1]} : vector<32x32xf32> to vector<32x16xf32>
    %cst_33 = arith.constant dense<0.000000e+00> : vector<32x32xf32>
    %48 = tpu.matmul %45, %46, %cst_33 {dimension_numbers = #tpu.dot_dimension_numbers<[1], [1], [0], [0], [0, 0, 1, 0], [], []>} : vector<32x16xf32>, vector<32x16xf32>, vector<32x32xf32> -> vector<32x32xf32>
    %c1 = arith.constant 1 : index
    %c0_34 = arith.constant 0 : index
    %c0_35 = arith.constant 0 : index
    %49 = vector.load %arg14[%c1, %c0_34, %c0_35] : memref<2x32x1xf32, #tpu.memory_space<vmem>>, vector<1x32x1xf32>
    %50 = vector.shape_cast %49 : vector<1x32x1xf32> to vector<32x1xf32>
    %cst_36 = arith.constant dense<0xFF800000> : vector<32xf32>
    %51 = vector.multi_reduction <maximumf>, %48, %cst_36 [1] : vector<32x32xf32> to vector<32xf32>
    %52 = vector.shape_cast %51 : vector<32xf32> to vector<32x1xf32>
    %53 = arith.maximumf %50, %52 : vector<32x1xf32>
    %54 = arith.subf %50, %53 : vector<32x1xf32>
    %55 = math.exp %54 : vector<32x1xf32>
    %56 = vector.broadcast %53 : vector<32x1xf32> to vector<32x32xf32>
    %57 = arith.subf %48, %56 : vector<32x32xf32>
    %58 = math.exp %57 : vector<32x32xf32>
    %c1_37 = arith.constant 1 : index
    %c0_38 = arith.constant 0 : index
    %c0_39 = arith.constant 0 : index
    %59 = vector.load %arg15[%c1_37, %c0_38, %c0_39] : memref<2x32x1xf32, #tpu.memory_space<vmem>>, vector<1x32x1xf32>
    %60 = vector.shape_cast %59 : vector<1x32x1xf32> to vector<32x1xf32>
    %61 = arith.mulf %55, %60 : vector<32x1xf32>
    %cst_40 = arith.constant dense<0.000000e+00> : vector<32xf32>
    %62 = vector.multi_reduction <add>, %58, %cst_40 [1] : vector<32x32xf32> to vector<32xf32>
    %63 = vector.shape_cast %62 : vector<32xf32> to vector<32x1xf32>
    %64 = arith.addf %61, %63 : vector<32x1xf32>
    %c1_41 = arith.constant 1 : index
    %c0_42 = arith.constant 0 : index
    %c0_43 = arith.constant 0 : index
    %65 = vector.load %arg15[%c1_41, %c0_42, %c0_43] : memref<2x32x1xf32, #tpu.memory_space<vmem>>, vector<1x32x1xf32>
    %66 = vector.shape_cast %65 : vector<1x32x1xf32> to vector<32x1xf32>
    %67 = vector.shape_cast %64 : vector<32x1xf32> to vector<1x32x1xf32>
    tpu.vector_store %arg15[%c1_41, %c0_42, %c0_43], %67 {strides = array<i32>} : memref<2x32x1xf32, #tpu.memory_space<vmem>>, vector<1x32x1xf32>,
    %c1_44 = arith.constant 1 : index
    %c0_45 = arith.constant 0 : index
    %c0_46 = arith.constant 0 : index
    %68 = vector.load %arg16[%c1_44, %c0_45, %c0_46] : memref<2x32x16xf32, #tpu.memory_space<vmem>>, vector<1x32x16xf32>
    %69 = vector.shape_cast %68 : vector<1x32x16xf32> to vector<32x16xf32>
    %70 = vector.broadcast %55 : vector<32x1xf32> to vector<32x16xf32>
    %71 = arith.mulf %70, %69 : vector<32x16xf32>
    %cst_47 = arith.constant dense<0.000000e+00> : vector<32x16xf32>
    %72 = tpu.matmul %58, %47, %cst_47 {dimension_numbers = #tpu.dot_dimension_numbers<[1], [0], [0], [1], [0, 0, 1, 1], [], []>} : vector<32x32xf32>, vector<32x16xf32>, vector<32x16xf32> -> vector<32x16xf32>
    %73 = arith.addf %71, %72 : vector<32x16xf32>
    %c1_48 = arith.constant 1 : index
    %c0_49 = arith.constant 0 : index
    %c0_50 = arith.constant 0 : index
    %74 = vector.load %arg16[%c1_48, %c0_49, %c0_50] : memref<2x32x16xf32, #tpu.memory_space<vmem>>, vector<1x32x16xf32>
    %75 = vector.shape_cast %74 : vector<1x32x16xf32> to vector<32x16xf32>
    %76 = vector.shape_cast %73 : vector<32x16xf32> to vector<1x32x16xf32>
    tpu.vector_store %arg16[%c1_48, %c0_49, %c0_50], %76 {strides = array<i32>} : memref<2x32x16xf32, #tpu.memory_space<vmem>>, vector<1x32x16xf32>,
    %c1_51 = arith.constant 1 : index
    %c0_52 = arith.constant 0 : index
    %c0_53 = arith.constant 0 : index
    %77 = vector.load %arg14[%c1_51, %c0_52, %c0_53] : memref<2x32x1xf32, #tpu.memory_space<vmem>>, vector<1x32x1xf32>
    %78 = vector.shape_cast %77 : vector<1x32x1xf32> to vector<32x1xf32>
    %79 = vector.shape_cast %53 : vector<32x1xf32> to vector<1x32x1xf32>
    tpu.vector_store %arg14[%c1_51, %c0_52, %c0_53], %79 {strides = array<i32>} : memref<2x32x1xf32, #tpu.memory_space<vmem>>, vector<1x32x1xf32>,
    %c2_i32 = arith.constant 2 : i32
    %80 = arith.cmpi eq, %arg1, %c2_i32 : i32
    %81 = arith.extui %80 : i1 to i32
    %c0_i32_54 = arith.constant 0 : i32
    %82 = arith.cmpi ne, %81, %c0_i32_54 : i32
    scf.if %82 {
      %cst_55 = arith.constant 0.000000e+00 : f32
      %83 = vector.broadcast %cst_55 : f32 to vector<32x32xf32>
      %c0_56 = arith.constant 0 : index
      %c0_57 = arith.constant 0 : index
      %c0_58 = arith.constant 0 : index
      %84 = vector.load %arg15[%c0_56, %c0_57, %c0_58] : memref<2x32x1xf32, #tpu.memory_space<vmem>>, vector<1x32x1xf32>
      %85 = vector.shape_cast %84 : vector<1x32x1xf32> to vector<32x1xf32>
      %86 = tpu.reciprocal %85 : vector<32x1xf32> -> vector<32x1xf32>
      %c0_59 = arith.constant 0 : index
      %c0_60 = arith.constant 0 : index
      %c0_61 = arith.constant 0 : index
      %87 = vector.load %arg16[%c0_59, %c0_60, %c0_61] : memref<2x32x16xf32, #tpu.memory_space<vmem>>, vector<1x32x16xf32>
      %88 = vector.shape_cast %87 : vector<1x32x16xf32> to vector<32x16xf32>
      %89 = vector.broadcast %86 : vector<32x1xf32> to vector<32x16xf32>
      %90 = arith.mulf %88, %89 : vector<32x16xf32>
      %c0_62 = arith.constant 0 : index
      %c0_63 = arith.constant 0 : index
      %91 = vector.load %arg8[%c0_62, %c0_63] : memref<32x32xf32, #tpu.memory_space<vmem>>, vector<16x32xf32>
      %cst_64 = arith.constant dense<0.000000e+00> : vector<32x32xf32>
      %92 = tpu.matmul %90, %91, %cst_64 {dimension_numbers = #tpu.dot_dimension_numbers<[1], [0], [0], [1], [0, 0, 1, 1], [], []>} : vector<32x16xf32>, vector<16x32xf32>, vector<32x32xf32> -> vector<32x32xf32>
      %93 = arith.addf %83, %92 : vector<32x32xf32>
      %c1_65 = arith.constant 1 : index
      %c0_66 = arith.constant 0 : index
      %c0_67 = arith.constant 0 : index
      %94 = vector.load %arg15[%c1_65, %c0_66, %c0_67] : memref<2x32x1xf32, #tpu.memory_space<vmem>>, vector<1x32x1xf32>
      %95 = vector.shape_cast %94 : vector<1x32x1xf32> to vector<32x1xf32>
      %96 = tpu.reciprocal %95 : vector<32x1xf32> -> vector<32x1xf32>
      %c1_68 = arith.constant 1 : index
      %c0_69 = arith.constant 0 : index
      %c0_70 = arith.constant 0 : index
      %97 = vector.load %arg16[%c1_68, %c0_69, %c0_70] : memref<2x32x16xf32, #tpu.memory_space<vmem>>, vector<1x32x16xf32>
      %98 = vector.shape_cast %97 : vector<1x32x16xf32> to vector<32x16xf32>
      %99 = vector.broadcast %96 : vector<32x1xf32> to vector<32x16xf32>
      %100 = arith.mulf %98, %99 : vector<32x16xf32>
      %c16 = arith.constant 16 : index
      %c0_71 = arith.constant 0 : index
      %101 = vector.load %arg8[%c16, %c0_71] : memref<32x32xf32, #tpu.memory_space<vmem>>, vector<16x32xf32>
      %cst_72 = arith.constant dense<0.000000e+00> : vector<32x32xf32>
      %102 = tpu.matmul %100, %101, %cst_72 {dimension_numbers = #tpu.dot_dimension_numbers<[1], [0], [0], [1], [0, 0, 1, 1], [], []>} : vector<32x16xf32>, vector<16x32xf32>, vector<32x32xf32> -> vector<32x32xf32>
      %103 = arith.addf %93, %102 : vector<32x32xf32>
      %c0_73 = arith.constant 0 : index
      %c0_74 = arith.constant 0 : index
      %104 = vector.load %arg9[%c0_73, %c0_74] : memref<1x32xf32, #tpu.memory_space<vmem>>, vector<1x32xf32>
      %105 = vector.broadcast %104 : vector<1x32xf32> to vector<32x32xf32>
      %106 = arith.addf %103, %105 : vector<32x32xf32>
      %c0_75 = arith.constant 0 : index
      %c0_76 = arith.constant 0 : index
      %107 = vector.load %arg2[%c0_75, %c0_76] : memref<32x32xf32, #tpu.memory_space<vmem>>, vector<32x32xf32>
      %108 = arith.addf %106, %107 : vector<32x32xf32>
      %cst_77 = arith.constant dense<0.000000e+00> : vector<32xf32>
      %109 = vector.multi_reduction <add>, %108, %cst_77 [1] : vector<32x32xf32> to vector<32xf32>
      %110 = vector.shape_cast %109 : vector<32xf32> to vector<32x1xf32>
      %cst_78 = arith.constant 3.200000e+01 : f32
      %111 = vector.broadcast %cst_78 : f32 to vector<32x1xf32>
      %112 = arith.divf %110, %111 : vector<32x1xf32>
      %113 = vector.broadcast %112 : vector<32x1xf32> to vector<32x32xf32>
      %114 = arith.subf %108, %113 : vector<32x32xf32>
      %115 = arith.mulf %114, %114 : vector<32x32xf32>
      %cst_79 = arith.constant dense<0.000000e+00> : vector<32xf32>
      %116 = vector.multi_reduction <add>, %115, %cst_79 [1] : vector<32x32xf32> to vector<32xf32>
      %117 = vector.shape_cast %116 : vector<32xf32> to vector<32x1xf32>
      %cst_80 = arith.constant 3.200000e+01 : f32
      %118 = vector.broadcast %cst_80 : f32 to vector<32x1xf32>
      %119 = arith.divf %117, %118 : vector<32x1xf32>
      %120 = vector.broadcast %112 : vector<32x1xf32> to vector<32x32xf32>
      %121 = arith.subf %108, %120 : vector<32x32xf32>
      %cst_81 = arith.constant 9.99999974E-6 : f32
      %122 = vector.broadcast %cst_81 : f32 to vector<32x1xf32>
      %123 = arith.addf %119, %122 : vector<32x1xf32>
      %124 = math.rsqrt %123 : vector<32x1xf32>
      %125 = vector.broadcast %124 : vector<32x1xf32> to vector<32x32xf32>
      %126 = arith.mulf %121, %125 : vector<32x32xf32>
      %c0_82 = arith.constant 0 : index
      %c0_83 = arith.constant 0 : index
      %127 = vector.load %arg10[%c0_82, %c0_83] : memref<1x32xf32, #tpu.memory_space<vmem>>, vector<1x32xf32>
      %128 = vector.broadcast %127 : vector<1x32xf32> to vector<32x32xf32>
      %129 = arith.mulf %126, %128 : vector<32x32xf32>
      %c0_84 = arith.constant 0 : index
      %c0_85 = arith.constant 0 : index
      %130 = vector.load %arg11[%c0_84, %c0_85] : memref<1x32xf32, #tpu.memory_space<vmem>>, vector<1x32xf32>
      %131 = vector.broadcast %130 : vector<1x32xf32> to vector<32x32xf32>
      %132 = arith.addf %129, %131 : vector<32x32xf32>
      %c0_86 = arith.constant 0 : index
      %c0_87 = arith.constant 0 : index
      %133 = vector.load %arg12[%c0_86, %c0_87] : memref<32x32xf32, #tpu.memory_space<vmem>>, vector<32x32xf32>
      tpu.vector_store %arg12[%c0_86, %c0_87], %132 {strides = array<i32>} : memref<32x32xf32, #tpu.memory_space<vmem>>, vector<32x32xf32>,
    } else {
    }
    return
  }
  func.func @transform_0(%arg0: i32, %arg1: i32) -> (i32, i32) {
    %c0_i32 = arith.constant 0 : i32
    %c0_i32_0 = arith.constant 0 : i32
    return %arg0, %c0_i32 : i32, i32
  }
  func.func @transform_1(%arg0: i32, %arg1: i32) -> (i32, i32) {
    %c0_i32 = arith.constant 0 : i32
    %c0_i32_0 = arith.constant 0 : i32
    return %arg1, %c0_i32 : i32, i32
  }
  func.func @transform_2(%arg0: i32, %arg1: i32) -> (i32, i32) {
    %c0_i32 = arith.constant 0 : i32
    %c0_i32_0 = arith.constant 0 : i32
    return %arg1, %c0_i32 : i32, i32
  }
  func.func @transform_3(%arg0: i32, %arg1: i32) -> (i32, i32) {
    %c0_i32 = arith.constant 0 : i32
    %c0_i32_0 = arith.constant 0 : i32
    %c0_i32_1 = arith.constant 0 : i32
    return %c0_i32, %c0_i32_0 : i32, i32
  }
  func.func @transform_4(%arg0: i32, %arg1: i32) -> (i32, i32) {
    %c0_i32 = arith.constant 0 : i32
    %c0_i32_0 = arith.constant 0 : i32
    %c0_i32_1 = arith.constant 0 : i32
    return %c0_i32, %c0_i32_0 : i32, i32
  }
  func.func @transform_5(%arg0: i32, %arg1: i32) -> (i32, i32) {
    %c0_i32 = arith.constant 0 : i32
    %c0_i32_0 = arith.constant 0 : i32
    %c0_i32_1 = arith.constant 0 : i32
    return %c0_i32, %c0_i32_0 : i32, i32
  }
  func.func @transform_6(%arg0: i32, %arg1: i32) -> (i32, i32) {
    %c0_i32 = arith.constant 0 : i32
    %c0_i32_0 = arith.constant 0 : i32
    %c0_i32_1 = arith.constant 0 : i32
    return %c0_i32, %c0_i32_0 : i32, i32
  }
  func.func @transform_7(%arg0: i32, %arg1: i32) -> (i32, i32) {
    %c0_i32 = arith.constant 0 : i32
    %c0_i32_0 = arith.constant 0 : i32
    %c0_i32_1 = arith.constant 0 : i32
    return %c0_i32, %c0_i32_0 : i32, i32
  }
  func.func @transform_8(%arg0: i32, %arg1: i32) -> (i32, i32) {
    %c0_i32 = arith.constant 0 : i32
    %c0_i32_0 = arith.constant 0 : i32
    %c0_i32_1 = arith.constant 0 : i32
    return %c0_i32, %c0_i32_0 : i32, i32
  }
  func.func @transform_9(%arg0: i32, %arg1: i32) -> (i32, i32) {
    %c0_i32 = arith.constant 0 : i32
    %c0_i32_0 = arith.constant 0 : i32
    %c0_i32_1 = arith.constant 0 : i32
    return %c0_i32, %c0_i32_0 : i32, i32
  }
  func.func @transform_10(%arg0: i32, %arg1: i32) -> (i32, i32) {
    %c0_i32 = arith.constant 0 : i32
    %c0_i32_0 = arith.constant 0 : i32
    return %arg0, %c0_i32 : i32, i32
  }
}

</mosaic_0001>

<llo_original>
// kernel: tpu_custom_call.1
$region0: #{tpu_custom_call.1}
  #allocation0 [shape = 'u32[]', space=smem, size = 0x4, offset = 0x4, fixed_abs, tag = 'smem constant byte address 0x4 - core index']
  #allocation1 [shape = 'u32[144,128]{1,0:T(1,128)}', space=vmem, size = 0x12000, scoped, tag = 'internal scratch']
  #allocation2 [shape = 'f32[32,32]{1,0:T(8,128)}', space=vmem, size = 0x4000, scoped, tag = 'scratch operand']
  #allocation3 [shape = 'f32[2,32,1]{2,1,0:T(8,128)}', space=vmem, size = 0x8000, scoped, tag = 'scratch operand']
  #allocation4 [shape = 'f32[2,32,1]{2,1,0:T(8,128)}', space=vmem, size = 0x8000, scoped, tag = 'scratch operand']
  #allocation5 [shape = 'f32[2,32,16]{2,1,0:T(8,128)}', space=vmem, size = 0x8000, scoped, tag = 'scratch operand']
  %s0 = inlined_call_operand.vmem [shape: f32[64,32], index: 0, kind: input, shape index: {}]
  %s1 = inlined_call_operand.vmem [shape: f32[96,32], index: 1, kind: input, shape index: {}]
  %s2 = inlined_call_operand.vmem [shape: f32[96,32], index: 2, kind: input, shape index: {}]
  %s3 = inlined_call_operand.vmem [shape: f32[32,32], index: 3, kind: input, shape index: {}]
  %s4 = inlined_call_operand.vmem [shape: f32[32,32], index: 4, kind: input, shape index: {}]
  %s5 = inlined_call_operand.vmem [shape: f32[32,32], index: 5, kind: input, shape index: {}]
  %s6 = inlined_call_operand.vmem [shape: f32[32,32], index: 6, kind: input, shape index: {}]
  %s7 = inlined_call_operand.vmem [shape: f32[1,32], index: 7, kind: input, shape index: {}]
  %s8 = inlined_call_operand.vmem [shape: f32[1,32], index: 8, kind: input, shape index: {}]
  %s9 = inlined_call_operand.vmem [shape: f32[1,32], index: 9, kind: input, shape index: {}]
  %s10 = inlined_call_operand.vmem [shape: f32[64,32], index: 10, kind: output, shape index: {}]
  %s11 = sld [smem:[#allocation0]]
  $region81: #{tpu_custom_call.1} parent=0
    _
  %s13 = ssub.s32 1, %s11
  %s14 = scalar_select 0, %s13, %s11
  loop: start=0, step=1, limit=8
  $region2: #{tpu_custom_call.1} parent=0 // loop_pre_header
    _
  $region3: #{tpu_custom_call.1} parent=0 // loop_header
    %s16 = sphi 0, %s20
    %p17 = scmp.ge.s32.totalorder %s16, 8
    %s23 = sphi 0, %s35
    %s24 = sphi 0, %s31
    %s25 = sphi 0, %s23
    %s26 = sphi 0, %s24
    %s27 = sphi 0, %s25
    %s28 = sphi 0, %s26
    %s38 = sphi 0, %s40
    %s41 = sphi 0, %s38
    %s42 = sphi 0, %s41
    %s58 = sphi 0, %s42
    %s64 = sphi 0, %s66
    %s67 = sphi 0, %s64
    %s68 = sphi 0, %s67
    %s84 = sphi 0, %s68
    %s90 = sphi 0, %s92
    %s93 = sphi 0, %s90
    %s94 = sphi 0, %s93
    %s110 = sphi 0, %s94
    %s114 = sphi 0, %s114
    %s116 = sphi 0, %s114
    %s117 = sphi 0, %s116
    %s131 = sphi 0, %s117
    %s135 = sphi 0, %s135
    %s137 = sphi 0, %s135
    %s138 = sphi 0, %s137
    %s152 = sphi 0, %s138
    %s156 = sphi 0, %s156
    %s158 = sphi 0, %s156
    %s159 = sphi 0, %s158
    %s173 = sphi 0, %s159
    %s177 = sphi 0, %s177
    %s179 = sphi 0, %s177
    %s180 = sphi 0, %s179
    %s194 = sphi 0, %s180
    %s198 = sphi 0, %s198
    %s200 = sphi 0, %s198
    %s201 = sphi 0, %s200
    %s215 = sphi 0, %s201
    %s219 = sphi 0, %s219
    %s221 = sphi 0, %s219
    %s222 = sphi 0, %s221
    %s236 = sphi 0, %s222
    %s240 = sphi 0, %s240
    %s242 = sphi 0, %s240
    %s243 = sphi 0, %s242
    %s257 = sphi 0, %s243
    %s263 = sphi 0, %s265
    %s266 = sphi 0, %s263
    %s267 = sphi 0, %s266
    %s283 = sphi 0, %s267
  $region4: #{tpu_custom_call.1} parent=0 // loop_header_branch
    %19 = sbr.rel (%p17) target = $region8
  $region5: #{tpu_custom_call.1} parent=0 // loop_body
    %s21 = ssub.s32 %s16, 1
    %s22 = ssub.s32 %s16, 2
    %s29 = sadd.s32 1, %s24
    %p30 = scmp.ge.s32.totalorder %s29, 3
    %s31 = scalar_select %p30, 0, %s29
    %s32 = sadd.s32 1, %s23
    %s33 = scalar_select %p30, %s32, %s23
    %p34 = scmp.ge.s32.totalorder %s33, 2
    %s35 = scalar_select %p34, 0, %s33
    %s36 = ssub.s32 %s23, %s35
    %p37 = scmp.eq.s32.totalorder %s36, 0
    %s39 = sadd.s32 %s38, 1
    %s40 = scalar_select %p37, %s38, %s39
    %p43 = pneg %p37
    %p44 = scmp.eq.s32.totalorder %s16, 5
    %p45 = por %p43, %p44
    %p46 = scmp.ne.s32.totalorder %s38, %s41
    %p47 = scmp.eq.s32.totalorder %s16, 0
    %p48 = por %p46, %p47
    %p49 = scmp.ne.s32.totalorder %s38, %s41
    %p50 = scmp.eq.s32.totalorder %s21, 5
    %p51 = por %p49, %p50
    %p52 = scmp.ne.s32.totalorder %s41, %s42
    %p53 = scmp.eq.s32.totalorder %s21, 0
    %p54 = por %p52, %p53
    %p55 = scmp.ne.s32.totalorder %s41, %s42
    %p56 = scmp.eq.s32.totalorder %s22, 5
    %p57 = por %p55, %p56
    %p59 = scmp.ne.s32.totalorder %s42, %s58
    %p60 = scmp.eq.s32.totalorder %s22, 0
    %p61 = por %p59, %p60
    %s62 = ssub.s32 %s24, %s31
    %p63 = scmp.eq.s32.totalorder %s62, 0
    %s65 = sadd.s32 %s64, 1
    %s66 = scalar_select %p63, %s64, %s65
    %p69 = pneg %p63
    %p70 = scmp.eq.s32.totalorder %s16, 5
    %p71 = por %p69, %p70
    %p72 = scmp.ne.s32.totalorder %s64, %s67
    %p73 = scmp.eq.s32.totalorder %s16, 0
    %p74 = por %p72, %p73
    %p75 = scmp.ne.s32.totalorder %s64, %s67
    %p76 = scmp.eq.s32.totalorder %s21, 5
    %p77 = por %p75, %p76
    %p78 = scmp.ne.s32.totalorder %s67, %s68
    %p79 = scmp.eq.s32.totalorder %s21, 0
    %p80 = por %p78, %p79
    %p81 = scmp.ne.s32.totalorder %s67, %s68
    %p82 = scmp.eq.s32.totalorder %s22, 5
    %p83 = por %p81, %p82
    %p85 = scmp.ne.s32.totalorder %s68, %s84
    %p86 = scmp.eq.s32.totalorder %s22, 0
    %p87 = por %p85, %p86
    %s88 = ssub.s32 %s24, %s31
    %p89 = scmp.eq.s32.totalorder %s88, 0
    %s91 = sadd.s32 %s90, 1
    %s92 = scalar_select %p89, %s90, %s91
    %p95 = pneg %p89
    %p96 = scmp.eq.s32.totalorder %s16, 5
    %p97 = por %p95, %p96
    %p98 = scmp.ne.s32.totalorder %s90, %s93
    %p99 = scmp.eq.s32.totalorder %s16, 0
    %p100 = por %p98, %p99
    %p101 = scmp.ne.s32.totalorder %s90, %s93
    %p102 = scmp.eq.s32.totalorder %s21, 5
    %p103 = por %p101, %p102
    %p104 = scmp.ne.s32.totalorder %s93, %s94
    %p105 = scmp.eq.s32.totalorder %s21, 0
    %p106 = por %p104, %p105
    %p107 = scmp.ne.s32.totalorder %s93, %s94
    %p108 = scmp.eq.s32.totalorder %s22, 5
    %p109 = por %p107, %p108
    %p111 = scmp.ne.s32.totalorder %s94, %s110
    %p112 = scmp.eq.s32.totalorder %s22, 0
    %p113 = por %p111, %p112
    %s115 = sadd.s32 %s114, 1
    %p118 = scmp.eq.s32.totalorder %s16, 5
    %p119 = scmp.ne.s32.totalorder %s114, %s116
    %p120 = scmp.eq.s32.totalorder %s16, 0
    %p121 = por %p119, %p120
    %p122 = scmp.ne.s32.totalorder %s114, %s116
    %p123 = scmp.eq.s32.totalorder %s21, 5
    %p124 = por %p122, %p123
    %p125 = scmp.ne.s32.totalorder %s116, %s117
    %p126 = scmp.eq.s32.totalorder %s21, 0
    %p127 = por %p125, %p126
    %p128 = scmp.ne.s32.totalorder %s116, %s117
    %p129 = scmp.eq.s32.totalorder %s22, 5
    %p130 = por %p128, %p129
    %p132 = scmp.ne.s32.totalorder %s117, %s131
    %p133 = scmp.eq.s32.totalorder %s22, 0
    %p134 = por %p132, %p133
    %s136 = sadd.s32 %s135, 1
    %p139 = scmp.eq.s32.totalorder %s16, 5
    %p140 = scmp.ne.s32.totalorder %s135, %s137
    %p141 = scmp.eq.s32.totalorder %s16, 0
    %p142 = por %p140, %p141
    %p143 = scmp.ne.s32.totalorder %s135, %s137
    %p144 = scmp.eq.s32.totalorder %s21, 5
    %p145 = por %p143, %p144
    %p146 = scmp.ne.s32.totalorder %s137, %s138
    %p147 = scmp.eq.s32.totalorder %s21, 0
    %p148 = por %p146, %p147
    %p149 = scmp.ne.s32.totalorder %s137, %s138
    %p150 = scmp.eq.s32.totalorder %s22, 5
    %p151 = por %p149, %p150
    %p153 = scmp.ne.s32.totalorder %s138, %s152
    %p154 = scmp.eq.s32.totalorder %s22, 0
    %p155 = por %p153, %p154
    %s157 = sadd.s32 %s156, 1
    %p160 = scmp.eq.s32.totalorder %s16, 5
    %p161 = scmp.ne.s32.totalorder %s156, %s158
    %p162 = scmp.eq.s32.totalorder %s16, 0
    %p163 = por %p161, %p162
    %p164 = scmp.ne.s32.totalorder %s156, %s158
    %p165 = scmp.eq.s32.totalorder %s21, 5
    %p166 = por %p164, %p165
    %p167 = scmp.ne.s32.totalorder %s158, %s159
    %p168 = scmp.eq.s32.totalorder %s21, 0
    %p169 = por %p167, %p168
    %p170 = scmp.ne.s32.totalorder %s158, %s159
    %p171 = scmp.eq.s32.totalorder %s22, 5
    %p172 = por %p170, %p171
    %p174 = scmp.ne.s32.totalorder %s159, %s173
    %p175 = scmp.eq.s32.totalorder %s22, 0
    %p176 = por %p174, %p175
    %s178 = sadd.s32 %s177, 1
    %p181 = scmp.eq.s32.totalorder %s16, 5
    %p182 = scmp.ne.s32.totalorder %s177, %s179
    %p183 = scmp.eq.s32.totalorder %s16, 0
    %p184 = por %p182, %p183
    %p185 = scmp.ne.s32.totalorder %s177, %s179
    %p186 = scmp.eq.s32.totalorder %s21, 5
    %p187 = por %p185, %p186
    %p188 = scmp.ne.s32.totalorder %s179, %s180
    %p189 = scmp.eq.s32.totalorder %s21, 0
    %p190 = por %p188, %p189
    %p191 = scmp.ne.s32.totalorder %s179, %s180
    %p192 = scmp.eq.s32.totalorder %s22, 5
    %p193 = por %p191, %p192
    %p195 = scmp.ne.s32.totalorder %s180, %s194
    %p196 = scmp.eq.s32.totalorder %s22, 0
    %p197 = por %p195, %p196
    %s199 = sadd.s32 %s198, 1
    %p202 = scmp.eq.s32.totalorder %s16, 5
    %p203 = scmp.ne.s32.totalorder %s198, %s200
    %p204 = scmp.eq.s32.totalorder %s16, 0
    %p205 = por %p203, %p204
    %p206 = scmp.ne.s32.totalorder %s198, %s200
    %p207 = scmp.eq.s32.totalorder %s21, 5
    %p208 = por %p206, %p207
    %p209 = scmp.ne.s32.totalorder %s200, %s201
    %p210 = scmp.eq.s32.totalorder %s21, 0
    %p211 = por %p209, %p210
    %p212 = scmp.ne.s32.totalorder %s200, %s201
    %p213 = scmp.eq.s32.totalorder %s22, 5
    %p214 = por %p212, %p213
    %p216 = scmp.ne.s32.totalorder %s201, %s215
    %p217 = scmp.eq.s32.totalorder %s22, 0
    %p218 = por %p216, %p217
    %s220 = sadd.s32 %s219, 1
    %p223 = scmp.eq.s32.totalorder %s16, 5
    %p224 = scmp.ne.s32.totalorder %s219, %s221
    %p225 = scmp.eq.s32.totalorder %s16, 0
    %p226 = por %p224, %p225
    %p227 = scmp.ne.s32.totalorder %s219, %s221
    %p228 = scmp.eq.s32.totalorder %s21, 5
    %p229 = por %p227, %p228
    %p230 = scmp.ne.s32.totalorder %s221, %s222
    %p231 = scmp.eq.s32.totalorder %s21, 0
    %p232 = por %p230, %p231
    %p233 = scmp.ne.s32.totalorder %s221, %s222
    %p234 = scmp.eq.s32.totalorder %s22, 5
    %p235 = por %p233, %p234
    %p237 = scmp.ne.s32.totalorder %s222, %s236
    %p238 = scmp.eq.s32.totalorder %s22, 0
    %p239 = por %p237, %p238
    %s241 = sadd.s32 %s240, 1
    %p244 = scmp.eq.s32.totalorder %s16, 5
    %p245 = scmp.ne.s32.totalorder %s240, %s242
    %p246 = scmp.eq.s32.totalorder %s16, 0
    %p247 = por %p245, %p246
    %p248 = scmp.ne.s32.totalorder %s240, %s242
    %p249 = scmp.eq.s32.totalorder %s21, 5
    %p250 = por %p248, %p249
    %p251 = scmp.ne.s32.totalorder %s242, %s243
    %p252 = scmp.eq.s32.totalorder %s21, 0
    %p253 = por %p251, %p252
    %p254 = scmp.ne.s32.totalorder %s242, %s243
    %p255 = scmp.eq.s32.totalorder %s22, 5
    %p256 = por %p254, %p255
    %p258 = scmp.ne.s32.totalorder %s243, %s257
    %p259 = scmp.eq.s32.totalorder %s22, 0
    %p260 = por %p258, %p259
    %s261 = ssub.s32 %s23, %s35
    %p262 = scmp.eq.s32.totalorder %s261, 0
    %s264 = sadd.s32 %s263, 1
    %s265 = scalar_select %p262, %s263, %s264
    %p268 = pneg %p262
    %p269 = scmp.eq.s32.totalorder %s16, 5
    %p270 = por %p268, %p269
    %p271 = scmp.ne.s32.totalorder %s263, %s266
    %p272 = scmp.eq.s32.totalorder %s16, 0
    %p273 = por %p271, %p272
    %p274 = scmp.ne.s32.totalorder %s263, %s266
    %p275 = scmp.eq.s32.totalorder %s21, 5
    %p276 = por %p274, %p275
    %p277 = scmp.ne.s32.totalorder %s266, %s267
    %p278 = scmp.eq.s32.totalorder %s21, 0
    %p279 = por %p277, %p278
    %p280 = scmp.ne.s32.totalorder %s266, %s267
    %p281 = scmp.eq.s32.totalorder %s22, 5
    %p282 = por %p280, %p281
    %p284 = scmp.ne.s32.totalorder %s267, %s283
    %p285 = scmp.eq.s32.totalorder %s22, 0
    %p286 = por %p284, %p285
    %p287 = scmp.le.s32.totalorder 1, %s16
    %p288 = scmp.lt.s32.totalorder %s16, 7
    %p289 = pnand %p287, %p288
    %p290 = pneg %p289
    // Predicated region
    $region9: #{tpu_custom_call.1} parent=5 // pred_check
      _
    $region10: #{tpu_custom_call.1} parent=5 // pred_check_branch
      %292 = sbr.rel (%p289) target = $region12
    $region11: #{tpu_custom_call.1} parent=5 // pred_region
      %s293 = ssub.s32 %s16, 1
      // Predicated region
      $region13: #{tpu_custom_call.1} parent=11 // pred_check
        %p294 = pneg %p127
      $region14: #{tpu_custom_call.1} parent=11 // pred_check_branch
        %296 = sbr.rel (%p294) target = $region16
      $region15: #{tpu_custom_call.1} parent=11 // pred_region
        _
      $region16: #{tpu_custom_call.1} parent=11 // pred_fallthru
        _
      // Predicated region
      $region17: #{tpu_custom_call.1} parent=11 // pred_check
        %p297 = pneg %p148
      $region18: #{tpu_custom_call.1} parent=11 // pred_check_branch
        %299 = sbr.rel (%p297) target = $region20
      $region19: #{tpu_custom_call.1} parent=11 // pred_region
        _
      $region20: #{tpu_custom_call.1} parent=11 // pred_fallthru
        _
      // Predicated region
      $region21: #{tpu_custom_call.1} parent=11 // pred_check
        %p300 = pneg %p169
      $region22: #{tpu_custom_call.1} parent=11 // pred_check_branch
        %302 = sbr.rel (%p300) target = $region24
      $region23: #{tpu_custom_call.1} parent=11 // pred_region
        _
      $region24: #{tpu_custom_call.1} parent=11 // pred_fallthru
        _
      // Predicated region
      $region25: #{tpu_custom_call.1} parent=11 // pred_check
        %p303 = pneg %p190
      $region26: #{tpu_custom_call.1} parent=11 // pred_check_branch
        %305 = sbr.rel (%p303) target = $region28
      $region27: #{tpu_custom_call.1} parent=11 // pred_region
        _
      $region28: #{tpu_custom_call.1} parent=11 // pred_fallthru
        _
      // Predicated region
      $region29: #{tpu_custom_call.1} parent=11 // pred_check
        %p306 = pneg %p211
      $region30: #{tpu_custom_call.1} parent=11 // pred_check_branch
        %308 = sbr.rel (%p306) target = $region32
      $region31: #{tpu_custom_call.1} parent=11 // pred_region
        _
      $region32: #{tpu_custom_call.1} parent=11 // pred_fallthru
        _
      // Predicated region
      $region33: #{tpu_custom_call.1} parent=11 // pred_check
        %p309 = pneg %p232
      $region34: #{tpu_custom_call.1} parent=11 // pred_check_branch
        %311 = sbr.rel (%p309) target = $region36
      $region35: #{tpu_custom_call.1} parent=11 // pred_region
        _
      $region36: #{tpu_custom_call.1} parent=11 // pred_fallthru
        _
      // Predicated region
      $region37: #{tpu_custom_call.1} parent=11 // pred_check
        %p312 = pneg %p253
      $region38: #{tpu_custom_call.1} parent=11 // pred_check_branch
        %314 = sbr.rel (%p312) target = $region40
      $region39: #{tpu_custom_call.1} parent=11 // pred_region
        _
      $region40: #{tpu_custom_call.1} parent=11 // pred_fallthru
        _
    $region12: #{tpu_custom_call.1} parent=5 // pred_fallthru
      _
    %p315 = scmp.lt.s32.totalorder %s16, 6
    // Predicated region
    $region41: #{tpu_custom_call.1} parent=5 // pred_check
      %p316 = pneg %p315
    $region42: #{tpu_custom_call.1} parent=5 // pred_check_branch
      %318 = sbr.rel (%p316) target = $region44
    $region43: #{tpu_custom_call.1} parent=5 // pred_region
      // Predicated region
      $region45: #{tpu_custom_call.1} parent=43 // pred_check
        %p319 = pneg %p48
      $region46: #{tpu_custom_call.1} parent=43 // pred_check_branch
        %321 = sbr.rel (%p319) target = $region48
      $region47: #{tpu_custom_call.1} parent=43 // pred_region
        %s322 = smul.u32 4, %s23
        %p323 = scmp.lt.s32.totalorder %s322, 7
        %s324 = scalar_select %p323, %s322, 7
        %s325 = smul.addr %s324, 8
        %s326 = scalar_lea.vmem %s0, %s325
        %s327 = smul.u32 4, %s23
      $region48: #{tpu_custom_call.1} parent=43 // pred_fallthru
        _
      // Predicated region
      $region49: #{tpu_custom_call.1} parent=43 // pred_check
        %p328 = pneg %p74
      $region50: #{tpu_custom_call.1} parent=43 // pred_check_branch
        %330 = sbr.rel (%p328) target = $region52
      $region51: #{tpu_custom_call.1} parent=43 // pred_region
        %s331 = smul.u32 4, %s24
        %p332 = scmp.lt.s32.totalorder %s331, 11
        %s333 = scalar_select %p332, %s331, 11
        %s334 = smul.addr %s333, 8
        %s335 = scalar_lea.vmem %s1, %s334
        %s336 = smul.u32 4, %s24
      $region52: #{tpu_custom_call.1} parent=43 // pred_fallthru
        _
      // Predicated region
      $region53: #{tpu_custom_call.1} parent=43 // pred_check
        %p337 = pneg %p100
      $region54: #{tpu_custom_call.1} parent=43 // pred_check_branch
        %339 = sbr.rel (%p337) target = $region56
      $region55: #{tpu_custom_call.1} parent=43 // pred_region
        %s340 = smul.u32 4, %s24
        %p341 = scmp.lt.s32.totalorder %s340, 11
        %s342 = scalar_select %p341, %s340, 11
        %s343 = smul.addr %s342, 8
        %s344 = scalar_lea.vmem %s2, %s343
        %s345 = smul.u32 4, %s24
      $region56: #{tpu_custom_call.1} parent=43 // pred_fallthru
        _
    $region44: #{tpu_custom_call.1} parent=5 // pred_fallthru
      _
    %p346 = scmp.le.s32.totalorder 1, %s16
    %p347 = scmp.lt.s32.totalorder %s16, 7
    %p348 = pnand %p346, %p347
    %p349 = pneg %p348
    // Predicated region
    $region57: #{tpu_custom_call.1} parent=5 // pred_check
      _
    $region58: #{tpu_custom_call.1} parent=5 // pred_check_branch
      %351 = sbr.rel (%p348) target = $region60
    $region59: #{tpu_custom_call.1} parent=5 // pred_region
      %s352 = ssub.s32 %s16, 1
      %s353 = smul.u32 4, %s25
      %p354 = scmp.lt.s32.totalorder %s353, 7
      %s355 = scalar_select %p354, %s353, 7
      %s356 = smul.addr %s355, 8
      %s357 = scalar_lea.vmem %s0, %s356
      %p358 = pneg %p54
      %p359 = pneg %p51
      %s360 = smul.u32 4, %s26
      %p361 = scmp.lt.s32.totalorder %s360, 11
      %s362 = scalar_select %p361, %s360, 11
      %s363 = smul.addr %s362, 8
      %s364 = scalar_lea.vmem %s1, %s363
      %p365 = pneg %p80
      %p366 = pneg %p77
      %s367 = smul.u32 4, %s26
      %p368 = scmp.lt.s32.totalorder %s367, 11
      %s369 = scalar_select %p368, %s367, 11
      %s370 = smul.addr %s369, 8
      %s371 = scalar_lea.vmem %s2, %s370
      %p372 = pneg %p106
      %p373 = pneg %p103
      %p374 = pneg %p127
      %p375 = pneg %p124
      %p376 = pneg %p148
      %p377 = pneg %p145
      %p378 = pneg %p169
      %p379 = pneg %p166
      %p380 = pneg %p190
      %p381 = pneg %p187
      %p382 = pneg %p211
      %p383 = pneg %p208
      %p384 = pneg %p232
      %p385 = pneg %p229
      %p386 = pneg %p253
      %p387 = pneg %p250
      %p388 = pneg %p279
      %p389 = pneg %p276
      %s390 = smul.u32 4, %s25
      %p391 = scmp.lt.s32.totalorder %s390, 7
      %s392 = scalar_select %p391, %s390, 7
      %s393 = smul.addr %s392, 8
      %s394 = scalar_lea.vmem %s10, %s393
      %s395 = smul.u32 4, %s25
      %p396 = scmp.lt.s32.totalorder %s395, 7
      %s397 = scalar_select %p396, %s395, 7
      %s398 = smul.addr %s397, 8
      %s399 = scalar_lea.vmem %s0, %s398
      %s400 = smul.u32 4, %s25
      %s401 = smul.u32 4, %s26
      %p402 = scmp.lt.s32.totalorder %s401, 11
      %s403 = scalar_select %p402, %s401, 11
      %s404 = smul.addr %s403, 8
      %s405 = scalar_lea.vmem %s1, %s404
      %s406 = smul.u32 4, %s26
      %s407 = smul.u32 4, %s26
      %p408 = scmp.lt.s32.totalorder %s407, 11
      %s409 = scalar_select %p408, %s407, 11
      %s410 = smul.addr %s409, 8
      %s411 = scalar_lea.vmem %s2, %s410
      %s412 = smul.u32 4, %s26
      %s413 = smul.u32 4, %s25
      %p414 = scmp.lt.s32.totalorder %s413, 7
      %s415 = scalar_select %p414, %s413, 7
      %s416 = smul.addr %s415, 8
      %s417 = scalar_lea.vmem %s10, %s416
      %s418 = smul.u32 4, %s25
      %p419 = scmp.eq.s32.totalorder %s26, 0
      // Predicated region
      $region61: #{tpu_custom_call.1} parent=59 // pred_check
        %p420 = pneg %p419
      $region62: #{tpu_custom_call.1} parent=59 // pred_check_branch
        %422 = sbr.rel (%p420) target = $region64
      $region63: #{tpu_custom_call.1} parent=59 // pred_region
        %v423 = vld [vmem:[%s399] sm:$0xff]
        %v424 = vld [vmem:[%s399 + $0x8] sm:$0xff]
        %v425 = vld [vmem:[%s399 + $0x10] sm:$0xff]
        %v426 = vld [vmem:[%s399 + $0x18] sm:$0xff]
        %v427 = vld [vmem:[%s3] sm:$0xff]
        %v428 = vld [vmem:[%s3 + $0x8] sm:$0xff]
        %v429 = vld [vmem:[%s3 + $0x10] sm:$0xff]
        %v430 = vld [vmem:[%s3 + $0x18] sm:$0xff]
        %vm431 = vcmask 261120
        %v433 = vsel %vm431, %v423, 0
        %v436 = vsel %vm431, %v424, 0
        %v439 = vsel %vm431, %v425, 0
        %v442 = vsel %vm431, %v426, 0
        %444 = vmatprep.subr.mxu0 0.0
        %445 = vmatpush1.msra.mxu0 %v427
        %446 = vmatprep.subr.mxu0 0.0
        %447 = vmatpush1.msra.mxu0 %v428
        %448 = vmatprep.subr.mxu0 0.0
        %449 = vmatpush1.msra.mxu0 %v429
        %450 = vmatprep.subr.mxu0 0.0
        %451 = vmatpush1.msra.mxu0 %v430
        %452 = vmatprep.subr.mxu0 0.0
        %453 = vmatpush1.msra.mxu0 0.0
        %454 = vmatprep.subr.mxu0 0.0
        %455 = vmatpush1.msra.mxu0 0.0
        %456 = vmatprep.subr.mxu0 0.0
        %457 = vmatpush1.msra.mxu0 0.0
        %458 = vmatprep.subr.mxu0 0.0
        %459 = vmatpush1.msra.mxu0 0.0
        %460 = vmatprep.subr.mxu0 0.0
        %461 = vmatpush1.msra.mxu0 0.0
        %462 = vmatprep.subr.mxu0 0.0
        %463 = vmatpush1.msra.mxu0 0.0
        %464 = vmatprep.subr.mxu0 0.0
        %465 = vmatpush1.msra.mxu0 0.0
        %466 = vmatprep.subr.mxu0 0.0
        %467 = vmatpush1.msra.mxu0 0.0
        %468 = vmatprep.subr.mxu0 0.0
        %469 = vmatpush1.msra.mxu0 0.0
        %470 = vmatprep.subr.mxu0 0.0
        %471 = vmatpush1.msra.mxu0 0.0
        %472 = vmatprep.subr.mxu0 0.0
        %473 = vmatpush1.msra.mxu0 0.0
        %474 = vmatprep.subr.mxu0 0.0
        %475 = vmatpush1.msra.mxu0 0.0
        %476 = vmatprep.subr.mxu0 0.0
        %477 = vmatpush1.msra.mxu0 0.0
        %478 = vmatprep.subr.mxu0 0.0
        %479 = vmatpush1.msra.mxu0 0.0
        %480 = vmatprep.subr.mxu0 0.0
        %481 = vmatpush1.msra.mxu0 0.0
        %482 = vmatprep.subr.mxu0 0.0
        %483 = vmatpush1.msra.mxu0 0.0
        %484 = vmatprep.subr.mxu0 0.0
        %485 = vmatpush1.msra.mxu0 0.0
        %486 = vmatprep.subr.mxu0 0.0
        %487 = vmatpush1.msra.mxu0 0.0
        %488 = vmatprep.subr.mxu0 0.0
        %489 = vmatpush1.msra.mxu0 0.0
        %490 = vmatprep.subr.mxu0 0.0
        %491 = vmatpush1.msra.mxu0 0.0
        %492 = vmatprep.subr.mxu0 0.0
        %493 = vmatpush1.msra.mxu0 0.0
        %494 = vmatprep.subr.mxu0 0.0
        %495 = vmatpush1.msra.mxu0 0.0
        %496 = vmatprep.subr.mxu0 0.0
        %497 = vmatpush1.msra.mxu0 0.0
        %498 = vmatprep.subr.mxu0 0.0
        %499 = vmatpush1.msra.mxu0 0.0
        %500 = vmatprep.subr.mxu0 0.0
        %501 = vmatpush1.msra.mxu0 0.0
        %502 = vmatprep.subr.mxu0 0.0
        %503 = vmatpush1.msra.mxu0 0.0
        %504 = vmatprep.subr.mxu0 0.0
        %505 = vmatpush1.msra.mxu0 0.0
        %506 = vmatprep.subr.mxu0 0.0
        %507 = vmatpush1.msra.mxu0 0.0
        %508 = vmatprep.mubr.f32.mxu0 0.0
        %509 = vmatmul.mubr.f32.gmra.mrb[0].mxu0 %v433
        %v510 = vpop.f32.mrb[0].mxu0
        %v511 = vadd.f32 0.0, %v510
        %v512 = vpop.f32.mrb[0].mxu0
        %513 = vmatprep.mubr.f32.mxu0 0.0
        %514 = vmatmul.mubr.f32.gmra.mrb[0].mxu0 %v436
        %v515 = vpop.f32.mrb[0].mxu0
        %v516 = vadd.f32 0.0, %v515
        %v517 = vpop.f32.mrb[0].mxu0
        %518 = vmatprep.mubr.f32.mxu0 0.0
        %519 = vmatmul.mubr.f32.gmra.mrb[0].mxu0 %v439
        %v520 = vpop.f32.mrb[0].mxu0
        %v521 = vadd.f32 0.0, %v520
        %v522 = vpop.f32.mrb[0].mxu0
        %523 = vmatprep.mubr.f32.mxu0 0.0
        %524 = vmatmul.mubr.f32.gmra.mrb[0].mxu0 %v442
        %v525 = vpop.f32.mrb[0].mxu0
        %v526 = vadd.f32 0.0, %v525
        %v527 = vpop.f32.mrb[0].mxu0
        %528 = vdwg.mxu0
        %v529 = vmul.f32 %v511, 0.25
        %v530 = vmul.f32 %v516, 0.25
        %v531 = vmul.f32 %v521, 0.25
        %v532 = vmul.f32 %v526, 0.25
        %533 = vst.msk [vmem:[#allocation2] sm:$0xff] %vm431, %v529
        %534 = vst.msk [vmem:[#allocation2 + $0x8] sm:$0xff] %vm431, %v530
        %535 = vst.msk [vmem:[#allocation2 + $0x10] sm:$0xff] %vm431, %v531
        %536 = vst.msk [vmem:[#allocation2 + $0x18] sm:$0xff] %vm431, %v532
        %vm537 = vcmask 7168
        %538 = vst.msk [vmem:[#allocation3] sm:$0xff] %vm537, -inf
        %539 = vst.msk [vmem:[#allocation3 + $0x8] sm:$0xff] %vm537, -inf
        %540 = vst.msk [vmem:[#allocation3 + $0x10] sm:$0xff] %vm537, -inf
        %541 = vst.msk [vmem:[#allocation3 + $0x18] sm:$0xff] %vm537, -inf
        %542 = vst.msk [vmem:[#allocation3 + $0x20] sm:$0xff] %vm537, -inf
        %543 = vst.msk [vmem:[#allocation3 + $0x28] sm:$0xff] %vm537, -inf
        %544 = vst.msk [vmem:[#allocation3 + $0x30] sm:$0xff] %vm537, -inf
        %545 = vst.msk [vmem:[#allocation3 + $0x38] sm:$0xff] %vm537, -inf
        %546 = vst.msk [vmem:[#allocation4] sm:$0xff] %vm537, 0.0
        %547 = vst.msk [vmem:[#allocation4 + $0x8] sm:$0xff] %vm537, 0.0
        %548 = vst.msk [vmem:[#allocation4 + $0x10] sm:$0xff] %vm537, 0.0
        %549 = vst.msk [vmem:[#allocation4 + $0x18] sm:$0xff] %vm537, 0.0
        %550 = vst.msk [vmem:[#allocation4 + $0x20] sm:$0xff] %vm537, 0.0
        %551 = vst.msk [vmem:[#allocation4 + $0x28] sm:$0xff] %vm537, 0.0
        %552 = vst.msk [vmem:[#allocation4 + $0x30] sm:$0xff] %vm537, 0.0
        %553 = vst.msk [vmem:[#allocation4 + $0x38] sm:$0xff] %vm537, 0.0
        %vm554 = vcmask 130048
        %555 = vst.msk [vmem:[#allocation5] sm:$0xff] %vm554, 0.0
        %556 = vst.msk [vmem:[#allocation5 + $0x8] sm:$0xff] %vm554, 0.0
        %557 = vst.msk [vmem:[#allocation5 + $0x10] sm:$0xff] %vm554, 0.0
        %558 = vst.msk [vmem:[#allocation5 + $0x18] sm:$0xff] %vm554, 0.0
        %559 = vst.msk [vmem:[#allocation5 + $0x20] sm:$0xff] %vm554, 0.0
        %560 = vst.msk [vmem:[#allocation5 + $0x28] sm:$0xff] %vm554, 0.0
        %561 = vst.msk [vmem:[#allocation5 + $0x30] sm:$0xff] %vm554, 0.0
        %562 = vst.msk [vmem:[#allocation5 + $0x38] sm:$0xff] %vm554, 0.0
      $region64: #{tpu_custom_call.1} parent=59 // pred_fallthru
        _
      %v563 = vld [vmem:[%s405] sm:$0xff]
      %v564 = vld [vmem:[%s405 + $0x8] sm:$0xff]
      %v565 = vld [vmem:[%s405 + $0x10] sm:$0xff]
      %v566 = vld [vmem:[%s405 + $0x18] sm:$0xff]
      %v567 = vld [vmem:[%s4] sm:$0xff]
      %v568 = vld [vmem:[%s4 + $0x8] sm:$0xff]
      %v569 = vld [vmem:[%s4 + $0x10] sm:$0xff]
      %v570 = vld [vmem:[%s4 + $0x18] sm:$0xff]
      %vm571 = vcmask 261120
      %v573 = vsel %vm571, %v563, 0
      %v576 = vsel %vm571, %v564, 0
      %v579 = vsel %vm571, %v565, 0
      %v582 = vsel %vm571, %v566, 0
      %584 = vmatprep.subr.mxu0 0.0
      %585 = vmatpush1.msra.mxu0 %v567
      %586 = vmatprep.subr.mxu0 0.0
      %587 = vmatpush1.msra.mxu0 %v568
      %588 = vmatprep.subr.mxu0 0.0
      %589 = vmatpush1.msra.mxu0 %v569
      %590 = vmatprep.subr.mxu0 0.0
      %591 = vmatpush1.msra.mxu0 %v570
      %592 = vmatprep.subr.mxu0 0.0
      %593 = vmatpush1.msra.mxu0 0.0
      %594 = vmatprep.subr.mxu0 0.0
      %595 = vmatpush1.msra.mxu0 0.0
      %596 = vmatprep.subr.mxu0 0.0
      %597 = vmatpush1.msra.mxu0 0.0
      %598 = vmatprep.subr.mxu0 0.0
      %599 = vmatpush1.msra.mxu0 0.0
      %600 = vmatprep.subr.mxu0 0.0
      %601 = vmatpush1.msra.mxu0 0.0
      %602 = vmatprep.subr.mxu0 0.0
      %603 = vmatpush1.msra.mxu0 0.0
      %604 = vmatprep.subr.mxu0 0.0
      %605 = vmatpush1.msra.mxu0 0.0
      %606 = vmatprep.subr.mxu0 0.0
      %607 = vmatpush1.msra.mxu0 0.0
      %608 = vmatprep.subr.mxu0 0.0
      %609 = vmatpush1.msra.mxu0 0.0
      %610 = vmatprep.subr.mxu0 0.0
      %611 = vmatpush1.msra.mxu0 0.0
      %612 = vmatprep.subr.mxu0 0.0
      %613 = vmatpush1.msra.mxu0 0.0
      %614 = vmatprep.subr.mxu0 0.0
      %615 = vmatpush1.msra.mxu0 0.0
      %616 = vmatprep.subr.mxu0 0.0
      %617 = vmatpush1.msra.mxu0 0.0
      %618 = vmatprep.subr.mxu0 0.0
      %619 = vmatpush1.msra.mxu0 0.0
      %620 = vmatprep.subr.mxu0 0.0
      %621 = vmatpush1.msra.mxu0 0.0
      %622 = vmatprep.subr.mxu0 0.0
      %623 = vmatpush1.msra.mxu0 0.0
      %624 = vmatprep.subr.mxu0 0.0
      %625 = vmatpush1.msra.mxu0 0.0
      %626 = vmatprep.subr.mxu0 0.0
      %627 = vmatpush1.msra.mxu0 0.0
      %628 = vmatprep.subr.mxu0 0.0
      %629 = vmatpush1.msra.mxu0 0.0
      %630 = vmatprep.subr.mxu0 0.0
      %631 = vmatpush1.msra.mxu0 0.0
      %632 = vmatprep.subr.mxu0 0.0
      %633 = vmatpush1.msra.mxu0 0.0
      %634 = vmatprep.subr.mxu0 0.0
      %635 = vmatpush1.msra.mxu0 0.0
      %636 = vmatprep.subr.mxu0 0.0
      %637 = vmatpush1.msra.mxu0 0.0
      %638 = vmatprep.subr.mxu0 0.0
      %639 = vmatpush1.msra.mxu0 0.0
      %640 = vmatprep.subr.mxu0 0.0
      %641 = vmatpush1.msra.mxu0 0.0
      %642 = vmatprep.subr.mxu0 0.0
      %643 = vmatpush1.msra.mxu0 0.0
      %644 = vmatprep.subr.mxu0 0.0
      %645 = vmatpush1.msra.mxu0 0.0
      %646 = vmatprep.subr.mxu0 0.0
      %647 = vmatpush1.msra.mxu0 0.0
      %648 = vmatprep.mubr.f32.mxu0 0.0
      %649 = vmatmul.mubr.f32.gmra.mrb[0].mxu0 %v573
      %v650 = vpop.f32.mrb[0].mxu0
      %v651 = vadd.f32 0.0, %v650
      %v652 = vpop.f32.mrb[0].mxu0
      %653 = vmatprep.mubr.f32.mxu0 0.0
      %654 = vmatmul.mubr.f32.gmra.mrb[0].mxu0 %v576
      %v655 = vpop.f32.mrb[0].mxu0
      %v656 = vadd.f32 0.0, %v655
      %v657 = vpop.f32.mrb[0].mxu0
      %658 = vmatprep.mubr.f32.mxu0 0.0
      %659 = vmatmul.mubr.f32.gmra.mrb[0].mxu0 %v579
      %v660 = vpop.f32.mrb[0].mxu0
      %v661 = vadd.f32 0.0, %v660
      %v662 = vpop.f32.mrb[0].mxu0
      %663 = vmatprep.mubr.f32.mxu0 0.0
      %664 = vmatmul.mubr.f32.gmra.mrb[0].mxu0 %v582
      %v665 = vpop.f32.mrb[0].mxu0
      %v666 = vadd.f32 0.0, %v665
      %v667 = vpop.f32.mrb[0].mxu0
      %668 = vdwg.mxu0
      %v669 = vld [vmem:[%s411] sm:$0xff]
      %v670 = vld [vmem:[%s411 + $0x8] sm:$0xff]
      %v671 = vld [vmem:[%s411 + $0x10] sm:$0xff]
      %v672 = vld [vmem:[%s411 + $0x18] sm:$0xff]
      %v673 = vld [vmem:[%s5] sm:$0xff]
      %v674 = vld [vmem:[%s5 + $0x8] sm:$0xff]
      %v675 = vld [vmem:[%s5 + $0x10] sm:$0xff]
      %v676 = vld [vmem:[%s5 + $0x18] sm:$0xff]
      %v678 = vsel %vm571, %v669, 0
      %v681 = vsel %vm571, %v670, 0
      %v684 = vsel %vm571, %v671, 0
      %v687 = vsel %vm571, %v672, 0
      %689 = vmatprep.subr.mxu0 0.0
      %690 = vmatpush1.msra.mxu0 %v673
      %691 = vmatprep.subr.mxu0 0.0
      %692 = vmatpush1.msra.mxu0 %v674
      %693 = vmatprep.subr.mxu0 0.0
      %694 = vmatpush1.msra.mxu0 %v675
      %695 = vmatprep.subr.mxu0 0.0
      %696 = vmatpush1.msra.mxu0 %v676
      %697 = vmatprep.subr.mxu0 0.0
      %698 = vmatpush1.msra.mxu0 0.0
      %699 = vmatprep.subr.mxu0 0.0
      %700 = vmatpush1.msra.mxu0 0.0
      %701 = vmatprep.subr.mxu0 0.0
      %702 = vmatpush1.msra.mxu0 0.0
      %703 = vmatprep.subr.mxu0 0.0
      %704 = vmatpush1.msra.mxu0 0.0
      %705 = vmatprep.subr.mxu0 0.0
      %706 = vmatpush1.msra.mxu0 0.0
      %707 = vmatprep.subr.mxu0 0.0
      %708 = vmatpush1.msra.mxu0 0.0
      %709 = vmatprep.subr.mxu0 0.0
      %710 = vmatpush1.msra.mxu0 0.0
      %711 = vmatprep.subr.mxu0 0.0
      %712 = vmatpush1.msra.mxu0 0.0
      %713 = vmatprep.subr.mxu0 0.0
      %714 = vmatpush1.msra.mxu0 0.0
      %715 = vmatprep.subr.mxu0 0.0
      %716 = vmatpush1.msra.mxu0 0.0
      %717 = vmatprep.subr.mxu0 0.0
      %718 = vmatpush1.msra.mxu0 0.0
      %719 = vmatprep.subr.mxu0 0.0
      %720 = vmatpush1.msra.mxu0 0.0
      %721 = vmatprep.subr.mxu0 0.0
      %722 = vmatpush1.msra.mxu0 0.0
      %723 = vmatprep.subr.mxu0 0.0
      %724 = vmatpush1.msra.mxu0 0.0
      %725 = vmatprep.subr.mxu0 0.0
      %726 = vmatpush1.msra.mxu0 0.0
      %727 = vmatprep.subr.mxu0 0.0
      %728 = vmatpush1.msra.mxu0 0.0
      %729 = vmatprep.subr.mxu0 0.0
      %730 = vmatpush1.msra.mxu0 0.0
      %731 = vmatprep.subr.mxu0 0.0
      %732 = vmatpush1.msra.mxu0 0.0
      %733 = vmatprep.subr.mxu0 0.0
      %734 = vmatpush1.msra.mxu0 0.0
      %735 = vmatprep.subr.mxu0 0.0
      %736 = vmatpush1.msra.mxu0 0.0
      %737 = vmatprep.subr.mxu0 0.0
      %738 = vmatpush1.msra.mxu0 0.0
      %739 = vmatprep.subr.mxu0 0.0
      %740 = vmatpush1.msra.mxu0 0.0
      %741 = vmatprep.subr.mxu0 0.0
      %742 = vmatpush1.msra.mxu0 0.0
      %743 = vmatprep.subr.mxu0 0.0
      %744 = vmatpush1.msra.mxu0 0.0
      %745 = vmatprep.subr.mxu0 0.0
      %746 = vmatpush1.msra.mxu0 0.0
      %747 = vmatprep.subr.mxu0 0.0
      %748 = vmatpush1.msra.mxu0 0.0
      %749 = vmatprep.subr.mxu0 0.0
      %750 = vmatpush1.msra.mxu0 0.0
      %751 = vmatprep.subr.mxu0 0.0
      %752 = vmatpush1.msra.mxu0 0.0
      %753 = vmatprep.mubr.f32.mxu0 0.0
      %754 = vmatmul.mubr.f32.gmra.mrb[0].mxu0 %v678
      %v755 = vpop.f32.mrb[0].mxu0
      %v756 = vadd.f32 0.0, %v755
      %v757 = vpop.f32.mrb[0].mxu0
      %758 = vmatprep.mubr.f32.mxu0 0.0
      %759 = vmatmul.mubr.f32.gmra.mrb[0].mxu0 %v681
      %v760 = vpop.f32.mrb[0].mxu0
      %v761 = vadd.f32 0.0, %v760
      %v762 = vpop.f32.mrb[0].mxu0
      %763 = vmatprep.mubr.f32.mxu0 0.0
      %764 = vmatmul.mubr.f32.gmra.mrb[0].mxu0 %v684
      %v765 = vpop.f32.mrb[0].mxu0
      %v766 = vadd.f32 0.0, %v765
      %v767 = vpop.f32.mrb[0].mxu0
      %768 = vmatprep.mubr.f32.mxu0 0.0
      %769 = vmatmul.mubr.f32.gmra.mrb[0].mxu0 %v687
      %v770 = vpop.f32.mrb[0].mxu0
      %v771 = vadd.f32 0.0, %v770
      %v772 = vpop.f32.mrb[0].mxu0
      %773 = vdwg.mxu0
      %v774 = vld [vmem:[#allocation2] sm:$0xff]
      %v775 = vld [vmem:[#allocation2 + $0x8] sm:$0xff]
      %v776 = vld [vmem:[#allocation2 + $0x10] sm:$0xff]
      %v777 = vld [vmem:[#allocation2 + $0x18] sm:$0xff]
      %vm778 = vcmask 130048
      %v780 = vsel %vm778, %v774, 0
      %v783 = vsel %vm778, %v775, 0
      %v786 = vsel %vm778, %v776, 0
      %v789 = vsel %vm778, %v777, 0
      %v792 = vsel %vm778, %v651, 0
      %v795 = vsel %vm778, %v656, 0
      %v798 = vsel %vm778, %v661, 0
      %v801 = vsel %vm778, %v666, 0
      %803 = vmatprep.subr.mxu0 0.0
      %804 = vmatpush1.xpose.msra.mxu0 %v792
      %805 = vmatprep.subr.mxu0 0.0
      %806 = vmatpush1.xpose.msra.mxu0 %v795
      %807 = vmatprep.subr.mxu0 0.0
      %808 = vmatpush1.xpose.msra.mxu0 %v798
      %809 = vmatprep.subr.mxu0 0.0
      %810 = vmatpush1.xpose.msra.mxu0 %v801
      %811 = vmatprep.subr.mxu0 0.0
      %812 = vmatpush1.xpose.msra.mxu0 0.0
      %813 = vmatprep.subr.mxu0 0.0
      %814 = vmatpush1.xpose.msra.mxu0 0.0
      %815 = vmatprep.subr.mxu0 0.0
      %816 = vmatpush1.xpose.msra.mxu0 0.0
      %817 = vmatprep.subr.mxu0 0.0
      %818 = vmatpush1.xpose.msra.mxu0 0.0
      %819 = vmatprep.subr.mxu0 0.0
      %820 = vmatpush1.xpose.msra.mxu0 0.0
      %821 = vmatprep.subr.mxu0 0.0
      %822 = vmatpush1.xpose.msra.mxu0 0.0
      %823 = vmatprep.subr.mxu0 0.0
      %824 = vmatpush1.xpose.msra.mxu0 0.0
      %825 = vmatprep.subr.mxu0 0.0
      %826 = vmatpush1.xpose.msra.mxu0 0.0
      %827 = vmatprep.subr.mxu0 0.0
      %828 = vmatpush1.xpose.msra.mxu0 0.0
      %829 = vmatprep.subr.mxu0 0.0
      %830 = vmatpush1.xpose.msra.mxu0 0.0
      %831 = vmatprep.subr.mxu0 0.0
      %832 = vmatpush1.xpose.msra.mxu0 0.0
      %833 = vmatprep.subr.mxu0 0.0
      %834 = vmatpush1.xpose.msra.mxu0 0.0
      %835 = vmatprep.subr.mxu0 0.0
      %836 = vmatpush1.xpose.msra.mxu0 0.0
      %837 = vmatprep.subr.mxu0 0.0
      %838 = vmatpush1.xpose.msra.mxu0 0.0
      %839 = vmatprep.subr.mxu0 0.0
      %840 = vmatpush1.xpose.msra.mxu0 0.0
      %841 = vmatprep.subr.mxu0 0.0
      %842 = vmatpush1.xpose.msra.mxu0 0.0
      %843 = vmatprep.subr.mxu0 0.0
      %844 = vmatpush1.xpose.msra.mxu0 0.0
      %845 = vmatprep.subr.mxu0 0.0
      %846 = vmatpush1.xpose.msra.mxu0 0.0
      %847 = vmatprep.subr.mxu0 0.0
      %848 = vmatpush1.xpose.msra.mxu0 0.0
      %849 = vmatprep.subr.mxu0 0.0
      %850 = vmatpush1.xpose.msra.mxu0 0.0
      %851 = vmatprep.subr.mxu0 0.0
      %852 = vmatpush1.xpose.msra.mxu0 0.0
      %853 = vmatprep.subr.mxu0 0.0
      %854 = vmatpush1.xpose.msra.mxu0 0.0
      %855 = vmatprep.subr.mxu0 0.0
      %856 = vmatpush1.xpose.msra.mxu0 0.0
      %857 = vmatprep.subr.mxu0 0.0
      %858 = vmatpush1.xpose.msra.mxu0 0.0
      %859 = vmatprep.subr.mxu0 0.0
      %860 = vmatpush1.xpose.msra.mxu0 0.0
      %861 = vmatprep.subr.mxu0 0.0
      %862 = vmatpush1.xpose.msra.mxu0 0.0
      %863 = vmatprep.subr.mxu0 0.0
      %864 = vmatpush1.xpose.msra.mxu0 0.0
      %865 = vmatprep.subr.mxu0 0.0
      %866 = vmatpush1.xpose.msra.mxu0 0.0
      %867 = vmatprep.mubr.f32.mxu0 0.0
      %868 = vmatmul.mubr.f32.gmra.mrb[0].mxu0 %v780
      %v869 = vpop.f32.mrb[0].mxu0
      %v870 = vadd.f32 0.0, %v869
      %v871 = vpop.f32.mrb[0].mxu0
      %872 = vmatprep.mubr.f32.mxu0 0.0
      %873 = vmatmul.mubr.f32.gmra.mrb[0].mxu0 %v783
      %v874 = vpop.f32.mrb[0].mxu0
      %v875 = vadd.f32 0.0, %v874
      %v876 = vpop.f32.mrb[0].mxu0
      %877 = vmatprep.mubr.f32.mxu0 0.0
      %878 = vmatmul.mubr.f32.gmra.mrb[0].mxu0 %v786
      %v879 = vpop.f32.mrb[0].mxu0
      %v880 = vadd.f32 0.0, %v879
      %v881 = vpop.f32.mrb[0].mxu0
      %882 = vmatprep.mubr.f32.mxu0 0.0
      %883 = vmatmul.mubr.f32.gmra.mrb[0].mxu0 %v789
      %v884 = vpop.f32.mrb[0].mxu0
      %v885 = vadd.f32 0.0, %v884
      %v886 = vpop.f32.mrb[0].mxu0
      %887 = vdwg.mxu0
      %v888 = vld [vmem:[#allocation3] sm:$0xff]
      %v889 = vld [vmem:[#allocation3 + $0x8] sm:$0xff]
      %v890 = vld [vmem:[#allocation3 + $0x10] sm:$0xff]
      %v891 = vld [vmem:[#allocation3 + $0x18] sm:$0xff]
      %v892 = vsel %vm571, %v870, -inf
      %893 = vmax.xlane.f32.xlu0 %v892
      %v894 = vpop.xlane.xlu0 %893
      %v895 = vsel %vm571, %v875, -inf
      %896 = vmax.xlane.f32.xlu0 %v895
      %v897 = vpop.xlane.xlu0 %896
      %v898 = vsel %vm571, %v880, -inf
      %899 = vmax.xlane.f32.xlu0 %v898
      %v900 = vpop.xlane.xlu0 %899
      %v901 = vsel %vm571, %v885, -inf
      %902 = vmax.xlane.f32.xlu0 %v901
      %v903 = vpop.xlane.xlu0 %902
      %v904 = vmax.f32 %v888, %v894
      %v905 = vmax.f32 %v889, %v897
      %v906 = vmax.f32 %v890, %v900
      %v907 = vmax.f32 %v891, %v903
      %v908 = vsub.f32 %v888, %v904
      %v909 = vsub.f32 %v889, %v905
      %v910 = vsub.f32 %v890, %v906
      %v911 = vsub.f32 %v891, %v907
      %v912 = vmul.f32 %v908, 1.442695
      %v913 = vpow.pop %v912
      %v914 = vmul.f32 %v909, 1.442695
      %v915 = vpow.pop %v914
      %v916 = vmul.f32 %v910, 1.442695
      %v917 = vpow.pop %v916
      %v918 = vmul.f32 %v911, 1.442695
      %v919 = vpow.pop %v918
      %921 = vset.pattern.permute.xlu0 0
      %922 = vperm.xlu0 %921, %v904
      %v923 = vpop.permute.xlu0 %922
      %926 = vset.pattern.permute.xlu0 0
      %927 = vperm.xlu0 %926, %v905
      %v928 = vpop.permute.xlu0 %927
      %931 = vset.pattern.permute.xlu0 0
      %932 = vperm.xlu0 %931, %v906
      %v933 = vpop.permute.xlu0 %932
      %936 = vset.pattern.permute.xlu0 0
      %937 = vperm.xlu0 %936, %v907
      %v938 = vpop.permute.xlu0 %937
      %v940 = vsub.f32 %v870, %v923
      %v941 = vsub.f32 %v875, %v928
      %v942 = vsub.f32 %v880, %v933
      %v943 = vsub.f32 %v885, %v938
      %v944 = vmul.f32 %v940, 1.442695
      %v945 = vpow.pop %v944
      %v946 = vmul.f32 %v941, 1.442695
      %v947 = vpow.pop %v946
      %v948 = vmul.f32 %v942, 1.442695
      %v949 = vpow.pop %v948
      %v950 = vmul.f32 %v943, 1.442695
      %v951 = vpow.pop %v950
      %v952 = vld [vmem:[#allocation4] sm:$0xff]
      %v953 = vld [vmem:[#allocation4 + $0x8] sm:$0xff]
      %v954 = vld [vmem:[#allocation4 + $0x10] sm:$0xff]
      %v955 = vld [vmem:[#allocation4 + $0x18] sm:$0xff]
      %v956 = vmul.f32 %v913, %v952
      %v957 = vmul.f32 %v915, %v953
      %v958 = vmul.f32 %v917, %v954
      %v959 = vmul.f32 %v919, %v955
      %v960 = vsel %vm571, %v945, 0.0
      %961 = vadd.xlane.f32.xlu0 %v960
      %v962 = vpop.xlane.xlu0 %961
      %v963 = vsel %vm571, %v947, 0.0
      %964 = vadd.xlane.f32.xlu0 %v963
      %v965 = vpop.xlane.xlu0 %964
      %v966 = vsel %vm571, %v949, 0.0
      %967 = vadd.xlane.f32.xlu0 %v966
      %v968 = vpop.xlane.xlu0 %967
      %v969 = vsel %vm571, %v951, 0.0
      %970 = vadd.xlane.f32.xlu0 %v969
      %v971 = vpop.xlane.xlu0 %970
      %v972 = vadd.f32 %v956, %v962
      %v973 = vadd.f32 %v957, %v965
      %v974 = vadd.f32 %v958, %v968
      %v975 = vadd.f32 %v959, %v971
      %vm976 = vcmask 7168
      %977 = vst.msk [vmem:[#allocation4] sm:$0xff] %vm976, %v972
      %978 = vst.msk [vmem:[#allocation4 + $0x8] sm:$0xff] %vm976, %v973
      %979 = vst.msk [vmem:[#allocation4 + $0x10] sm:$0xff] %vm976, %v974
      %980 = vst.msk [vmem:[#allocation4 + $0x18] sm:$0xff] %vm976, %v975
      %v981 = vld [vmem:[#allocation5] sm:$0xff]
      %v982 = vld [vmem:[#allocation5 + $0x8] sm:$0xff]
      %v983 = vld [vmem:[#allocation5 + $0x10] sm:$0xff]
      %v984 = vld [vmem:[#allocation5 + $0x18] sm:$0xff]
      %986 = vset.pattern.permute.xlu0 0
      %987 = vperm.xlu0 %986, %v913
      %v988 = vpop.permute.xlu0 %987
      %991 = vset.pattern.permute.xlu0 0
      %992 = vperm.xlu0 %991, %v915
      %v993 = vpop.permute.xlu0 %992
      %996 = vset.pattern.permute.xlu0 0
      %997 = vperm.xlu0 %996, %v917
      %v998 = vpop.permute.xlu0 %997
      %1001 = vset.pattern.permute.xlu0 0
      %1002 = vperm.xlu0 %1001, %v919
      %v1003 = vpop.permute.xlu0 %1002
      %v1005 = vmul.f32 %v988, %v981
      %v1006 = vmul.f32 %v993, %v982
      %v1007 = vmul.f32 %v998, %v983
      %v1008 = vmul.f32 %v1003, %v984
      %v1010 = vsel %vm571, %v945, 0
      %v1013 = vsel %vm571, %v947, 0
      %v1016 = vsel %vm571, %v949, 0
      %v1019 = vsel %vm571, %v951, 0
      %1021 = vmatprep.subr.mxu0 0.0
      %1022 = vmatpush1.msra.mxu0 %v756
      %1023 = vmatprep.subr.mxu0 0.0
      %1024 = vmatpush1.msra.mxu0 %v761
      %1025 = vmatprep.subr.mxu0 0.0
      %1026 = vmatpush1.msra.mxu0 %v766
      %1027 = vmatprep.subr.mxu0 0.0
      %1028 = vmatpush1.msra.mxu0 %v771
      %1029 = vmatprep.subr.mxu0 0.0
      %1030 = vmatpush1.msra.mxu0 0.0
      %1031 = vmatprep.subr.mxu0 0.0
      %1032 = vmatpush1.msra.mxu0 0.0
      %1033 = vmatprep.subr.mxu0 0.0
      %1034 = vmatpush1.msra.mxu0 0.0
      %1035 = vmatprep.subr.mxu0 0.0
      %1036 = vmatpush1.msra.mxu0 0.0
      %1037 = vmatprep.subr.mxu0 0.0
      %1038 = vmatpush1.msra.mxu0 0.0
      %1039 = vmatprep.subr.mxu0 0.0
      %1040 = vmatpush1.msra.mxu0 0.0
      %1041 = vmatprep.subr.mxu0 0.0
      %1042 = vmatpush1.msra.mxu0 0.0
      %1043 = vmatprep.subr.mxu0 0.0
      %1044 = vmatpush1.msra.mxu0 0.0
      %1045 = vmatprep.subr.mxu0 0.0
      %1046 = vmatpush1.msra.mxu0 0.0
      %1047 = vmatprep.subr.mxu0 0.0
      %1048 = vmatpush1.msra.mxu0 0.0
      %1049 = vmatprep.subr.mxu0 0.0
      %1050 = vmatpush1.msra.mxu0 0.0
      %1051 = vmatprep.subr.mxu0 0.0
      %1052 = vmatpush1.msra.mxu0 0.0
      %1053 = vmatprep.subr.mxu0 0.0
      %1054 = vmatpush1.msra.mxu0 0.0
      %1055 = vmatprep.subr.mxu0 0.0
      %1056 = vmatpush1.msra.mxu0 0.0
      %1057 = vmatprep.subr.mxu0 0.0
      %1058 = vmatpush1.msra.mxu0 0.0
      %1059 = vmatprep.subr.mxu0 0.0
      %1060 = vmatpush1.msra.mxu0 0.0
      %1061 = vmatprep.subr.mxu0 0.0
      %1062 = vmatpush1.msra.mxu0 0.0
      %1063 = vmatprep.subr.mxu0 0.0
      %1064 = vmatpush1.msra.mxu0 0.0
      %1065 = vmatprep.subr.mxu0 0.0
      %1066 = vmatpush1.msra.mxu0 0.0
      %1067 = vmatprep.subr.mxu0 0.0
      %1068 = vmatpush1.msra.mxu0 0.0
      %1069 = vmatprep.subr.mxu0 0.0
      %1070 = vmatpush1.msra.mxu0 0.0
      %1071 = vmatprep.subr.mxu0 0.0
      %1072 = vmatpush1.msra.mxu0 0.0
      %1073 = vmatprep.subr.mxu0 0.0
      %1074 = vmatpush1.msra.mxu0 0.0
      %1075 = vmatprep.subr.mxu0 0.0
      %1076 = vmatpush1.msra.mxu0 0.0
      %1077 = vmatprep.subr.mxu0 0.0
      %1078 = vmatpush1.msra.mxu0 0.0
      %1079 = vmatprep.subr.mxu0 0.0
      %1080 = vmatpush1.msra.mxu0 0.0
      %1081 = vmatprep.subr.mxu0 0.0
      %1082 = vmatpush1.msra.mxu0 0.0
      %1083 = vmatprep.subr.mxu0 0.0
      %1084 = vmatpush1.msra.mxu0 0.0
      %1085 = vmatprep.mubr.f32.mxu0 0.0
      %1086 = vmatmul.mubr.f32.gmra.mrb[0].mxu0 %v1010
      %v1087 = vpop.f32.mrb[0].mxu0
      %v1088 = vadd.f32 0.0, %v1087
      %v1089 = vpop.f32.mrb[0].mxu0
      %1090 = vmatprep.mubr.f32.mxu0 0.0
      %1091 = vmatmul.mubr.f32.gmra.mrb[0].mxu0 %v1013
      %v1092 = vpop.f32.mrb[0].mxu0
      %v1093 = vadd.f32 0.0, %v1092
      %v1094 = vpop.f32.mrb[0].mxu0
      %1095 = vmatprep.mubr.f32.mxu0 0.0
      %1096 = vmatmul.mubr.f32.gmra.mrb[0].mxu0 %v1016
      %v1097 = vpop.f32.mrb[0].mxu0
      %v1098 = vadd.f32 0.0, %v1097
      %v1099 = vpop.f32.mrb[0].mxu0
      %1100 = vmatprep.mubr.f32.mxu0 0.0
      %1101 = vmatmul.mubr.f32.gmra.mrb[0].mxu0 %v1019
      %v1102 = vpop.f32.mrb[0].mxu0
      %v1103 = vadd.f32 0.0, %v1102
      %v1104 = vpop.f32.mrb[0].mxu0
      %1105 = vdwg.mxu0
      %v1106 = vadd.f32 %v1005, %v1088
      %v1107 = vadd.f32 %v1006, %v1093
      %v1108 = vadd.f32 %v1007, %v1098
      %v1109 = vadd.f32 %v1008, %v1103
      %1110 = vst.msk [vmem:[#allocation5] sm:$0xff] %vm778, %v1106
      %1111 = vst.msk [vmem:[#allocation5 + $0x8] sm:$0xff] %vm778, %v1107
      %1112 = vst.msk [vmem:[#allocation5 + $0x10] sm:$0xff] %vm778, %v1108
      %1113 = vst.msk [vmem:[#allocation5 + $0x18] sm:$0xff] %vm778, %v1109
      %1114 = vst.msk [vmem:[#allocation3] sm:$0xff] %vm976, %v904
      %1115 = vst.msk [vmem:[#allocation3 + $0x8] sm:$0xff] %vm976, %v905
      %1116 = vst.msk [vmem:[#allocation3 + $0x10] sm:$0xff] %vm976, %v906
      %1117 = vst.msk [vmem:[#allocation3 + $0x18] sm:$0xff] %vm976, %v907
      %1118 = vrot.lane.b32.xlu0 %v774, 112
      %v1119 = vpop.permute.xlu0 %1118
      %1120 = vrot.lane.b32.xlu0 %v775, 112
      %v1121 = vpop.permute.xlu0 %1120
      %1122 = vrot.lane.b32.xlu0 %v776, 112
      %v1123 = vpop.permute.xlu0 %1122
      %1124 = vrot.lane.b32.xlu0 %v777, 112
      %v1125 = vpop.permute.xlu0 %1124
      %1126 = vrot.lane.b32.xlu0 %v651, 112
      %v1127 = vpop.permute.xlu0 %1126
      %1128 = vrot.lane.b32.xlu0 %v656, 112
      %v1129 = vpop.permute.xlu0 %1128
      %1130 = vrot.lane.b32.xlu0 %v661, 112
      %v1131 = vpop.permute.xlu0 %1130
      %1132 = vrot.lane.b32.xlu0 %v666, 112
      %v1133 = vpop.permute.xlu0 %1132
      %v1134 = vsel %vm778, %v1119, 0
      %v1136 = vsel %vm778, %v1121, 0
      %v1138 = vsel %vm778, %v1123, 0
      %v1140 = vsel %vm778, %v1125, 0
      %v1142 = vsel %vm778, %v1127, 0
      %v1144 = vsel %vm778, %v1129, 0
      %v1146 = vsel %vm778, %v1131, 0
      %v1148 = vsel %vm778, %v1133, 0
      %1150 = vmatprep.subr.mxu0 0.0
      %1151 = vmatpush1.xpose.msra.mxu0 %v1142
      %1152 = vmatprep.subr.mxu0 0.0
      %1153 = vmatpush1.xpose.msra.mxu0 %v1144
      %1154 = vmatprep.subr.mxu0 0.0
      %1155 = vmatpush1.xpose.msra.mxu0 %v1146
      %1156 = vmatprep.subr.mxu0 0.0
      %1157 = vmatpush1.xpose.msra.mxu0 %v1148
      %1158 = vmatprep.subr.mxu0 0.0
      %1159 = vmatpush1.xpose.msra.mxu0 0.0
      %1160 = vmatprep.subr.mxu0 0.0
      %1161 = vmatpush1.xpose.msra.mxu0 0.0
      %1162 = vmatprep.subr.mxu0 0.0
      %1163 = vmatpush1.xpose.msra.mxu0 0.0
      %1164 = vmatprep.subr.mxu0 0.0
      %1165 = vmatpush1.xpose.msra.mxu0 0.0
      %1166 = vmatprep.subr.mxu0 0.0
      %1167 = vmatpush1.xpose.msra.mxu0 0.0
      %1168 = vmatprep.subr.mxu0 0.0
      %1169 = vmatpush1.xpose.msra.mxu0 0.0
      %1170 = vmatprep.subr.mxu0 0.0
      %1171 = vmatpush1.xpose.msra.mxu0 0.0
      %1172 = vmatprep.subr.mxu0 0.0
      %1173 = vmatpush1.xpose.msra.mxu0 0.0
      %1174 = vmatprep.subr.mxu0 0.0
      %1175 = vmatpush1.xpose.msra.mxu0 0.0
      %1176 = vmatprep.subr.mxu0 0.0
      %1177 = vmatpush1.xpose.msra.mxu0 0.0
      %1178 = vmatprep.subr.mxu0 0.0
      %1179 = vmatpush1.xpose.msra.mxu0 0.0
      %1180 = vmatprep.subr.mxu0 0.0
      %1181 = vmatpush1.xpose.msra.mxu0 0.0
      %1182 = vmatprep.subr.mxu0 0.0
      %1183 = vmatpush1.xpose.msra.mxu0 0.0
      %1184 = vmatprep.subr.mxu0 0.0
      %1185 = vmatpush1.xpose.msra.mxu0 0.0
      %1186 = vmatprep.subr.mxu0 0.0
      %1187 = vmatpush1.xpose.msra.mxu0 0.0
      %1188 = vmatprep.subr.mxu0 0.0
      %1189 = vmatpush1.xpose.msra.mxu0 0.0
      %1190 = vmatprep.subr.mxu0 0.0
      %1191 = vmatpush1.xpose.msra.mxu0 0.0
      %1192 = vmatprep.subr.mxu0 0.0
      %1193 = vmatpush1.xpose.msra.mxu0 0.0
      %1194 = vmatprep.subr.mxu0 0.0
      %1195 = vmatpush1.xpose.msra.mxu0 0.0
      %1196 = vmatprep.subr.mxu0 0.0
      %1197 = vmatpush1.xpose.msra.mxu0 0.0
      %1198 = vmatprep.subr.mxu0 0.0
      %1199 = vmatpush1.xpose.msra.mxu0 0.0
      %1200 = vmatprep.subr.mxu0 0.0
      %1201 = vmatpush1.xpose.msra.mxu0 0.0
      %1202 = vmatprep.subr.mxu0 0.0
      %1203 = vmatpush1.xpose.msra.mxu0 0.0
      %1204 = vmatprep.subr.mxu0 0.0
      %1205 = vmatpush1.xpose.msra.mxu0 0.0
      %1206 = vmatprep.subr.mxu0 0.0
      %1207 = vmatpush1.xpose.msra.mxu0 0.0
      %1208 = vmatprep.subr.mxu0 0.0
      %1209 = vmatpush1.xpose.msra.mxu0 0.0
      %1210 = vmatprep.subr.mxu0 0.0
      %1211 = vmatpush1.xpose.msra.mxu0 0.0
      %1212 = vmatprep.subr.mxu0 0.0
      %1213 = vmatpush1.xpose.msra.mxu0 0.0
      %1214 = vmatprep.mubr.f32.mxu0 0.0
      %1215 = vmatmul.mubr.f32.gmra.mrb[0].mxu0 %v1134
      %v1216 = vpop.f32.mrb[0].mxu0
      %v1217 = vadd.f32 0.0, %v1216
      %v1218 = vpop.f32.mrb[0].mxu0
      %1219 = vmatprep.mubr.f32.mxu0 0.0
      %1220 = vmatmul.mubr.f32.gmra.mrb[0].mxu0 %v1136
      %v1221 = vpop.f32.mrb[0].mxu0
      %v1222 = vadd.f32 0.0, %v1221
      %v1223 = vpop.f32.mrb[0].mxu0
      %1224 = vmatprep.mubr.f32.mxu0 0.0
      %1225 = vmatmul.mubr.f32.gmra.mrb[0].mxu0 %v1138
      %v1226 = vpop.f32.mrb[0].mxu0
      %v1227 = vadd.f32 0.0, %v1226
      %v1228 = vpop.f32.mrb[0].mxu0
      %1229 = vmatprep.mubr.f32.mxu0 0.0
      %1230 = vmatmul.mubr.f32.gmra.mrb[0].mxu0 %v1140
      %v1231 = vpop.f32.mrb[0].mxu0
      %v1232 = vadd.f32 0.0, %v1231
      %v1233 = vpop.f32.mrb[0].mxu0
      %1234 = vdwg.mxu0
      %s1235 = scalar_lea.vmem [#allocation3], 32
      %v1236 = vld [vmem:[%s1235] sm:$0xff]
      %v1237 = vld [vmem:[%s1235 + $0x8] sm:$0xff]
      %v1238 = vld [vmem:[%s1235 + $0x10] sm:$0xff]
      %v1239 = vld [vmem:[%s1235 + $0x18] sm:$0xff]
      %v1240 = vsel %vm571, %v1217, -inf
      %1241 = vmax.xlane.f32.xlu0 %v1240
      %v1242 = vpop.xlane.xlu0 %1241
      %v1243 = vsel %vm571, %v1222, -inf
      %1244 = vmax.xlane.f32.xlu0 %v1243
      %v1245 = vpop.xlane.xlu0 %1244
      %v1246 = vsel %vm571, %v1227, -inf
      %1247 = vmax.xlane.f32.xlu0 %v1246
      %v1248 = vpop.xlane.xlu0 %1247
      %v1249 = vsel %vm571, %v1232, -inf
      %1250 = vmax.xlane.f32.xlu0 %v1249
      %v1251 = vpop.xlane.xlu0 %1250
      %v1252 = vmax.f32 %v1236, %v1242
      %v1253 = vmax.f32 %v1237, %v1245
      %v1254 = vmax.f32 %v1238, %v1248
      %v1255 = vmax.f32 %v1239, %v1251
      %v1256 = vsub.f32 %v1236, %v1252
      %v1257 = vsub.f32 %v1237, %v1253
      %v1258 = vsub.f32 %v1238, %v1254
      %v1259 = vsub.f32 %v1239, %v1255
      %v1260 = vmul.f32 %v1256, 1.442695
      %v1261 = vpow.pop %v1260
      %v1262 = vmul.f32 %v1257, 1.442695
      %v1263 = vpow.pop %v1262
      %v1264 = vmul.f32 %v1258, 1.442695
      %v1265 = vpow.pop %v1264
      %v1266 = vmul.f32 %v1259, 1.442695
      %v1267 = vpow.pop %v1266
      %1269 = vset.pattern.permute.xlu0 0
      %1270 = vperm.xlu0 %1269, %v1252
      %v1271 = vpop.permute.xlu0 %1270
      %1274 = vset.pattern.permute.xlu0 0
      %1275 = vperm.xlu0 %1274, %v1253
      %v1276 = vpop.permute.xlu0 %1275
      %1279 = vset.pattern.permute.xlu0 0
      %1280 = vperm.xlu0 %1279, %v1254
      %v1281 = vpop.permute.xlu0 %1280
      %1284 = vset.pattern.permute.xlu0 0
      %1285 = vperm.xlu0 %1284, %v1255
      %v1286 = vpop.permute.xlu0 %1285
      %v1288 = vsub.f32 %v1217, %v1271
      %v1289 = vsub.f32 %v1222, %v1276
      %v1290 = vsub.f32 %v1227, %v1281
      %v1291 = vsub.f32 %v1232, %v1286
      %v1292 = vmul.f32 %v1288, 1.442695
      %v1293 = vpow.pop %v1292
      %v1294 = vmul.f32 %v1289, 1.442695
      %v1295 = vpow.pop %v1294
      %v1296 = vmul.f32 %v1290, 1.442695
      %v1297 = vpow.pop %v1296
      %v1298 = vmul.f32 %v1291, 1.442695
      %v1299 = vpow.pop %v1298
      %s1300 = scalar_lea.vmem [#allocation4], 32
      %v1301 = vld [vmem:[%s1300] sm:$0xff]
      %v1302 = vld [vmem:[%s1300 + $0x8] sm:$0xff]
      %v1303 = vld [vmem:[%s1300 + $0x10] sm:$0xff]
      %v1304 = vld [vmem:[%s1300 + $0x18] sm:$0xff]
      %v1305 = vmul.f32 %v1261, %v1301
      %v1306 = vmul.f32 %v1263, %v1302
      %v1307 = vmul.f32 %v1265, %v1303
      %v1308 = vmul.f32 %v1267, %v1304
      %v1309 = vsel %vm571, %v1293, 0.0
      %1310 = vadd.xlane.f32.xlu0 %v1309
      %v1311 = vpop.xlane.xlu0 %1310
      %v1312 = vsel %vm571, %v1295, 0.0
      %1313 = vadd.xlane.f32.xlu0 %v1312
      %v1314 = vpop.xlane.xlu0 %1313
      %v1315 = vsel %vm571, %v1297, 0.0
      %1316 = vadd.xlane.f32.xlu0 %v1315
      %v1317 = vpop.xlane.xlu0 %1316
      %v1318 = vsel %vm571, %v1299, 0.0
      %1319 = vadd.xlane.f32.xlu0 %v1318
      %v1320 = vpop.xlane.xlu0 %1319
      %v1321 = vadd.f32 %v1305, %v1311
      %v1322 = vadd.f32 %v1306, %v1314
      %v1323 = vadd.f32 %v1307, %v1317
      %v1324 = vadd.f32 %v1308, %v1320
      %1325 = vst.msk [vmem:[%s1300] sm:$0xff] %vm976, %v1321
      %1326 = vst.msk [vmem:[%s1300 + $0x8] sm:$0xff] %vm976, %v1322
      %1327 = vst.msk [vmem:[%s1300 + $0x10] sm:$0xff] %vm976, %v1323
      %1328 = vst.msk [vmem:[%s1300 + $0x18] sm:$0xff] %vm976, %v1324
      %s1329 = scalar_lea.vmem [#allocation5], 32
      %v1330 = vld [vmem:[%s1329] sm:$0xff]
      %v1331 = vld [vmem:[%s1329 + $0x8] sm:$0xff]
      %v1332 = vld [vmem:[%s1329 + $0x10] sm:$0xff]
      %v1333 = vld [vmem:[%s1329 + $0x18] sm:$0xff]
      %1335 = vset.pattern.permute.xlu0 0
      %1336 = vperm.xlu0 %1335, %v1261
      %v1337 = vpop.permute.xlu0 %1336
      %1340 = vset.pattern.permute.xlu0 0
      %1341 = vperm.xlu0 %1340, %v1263
      %v1342 = vpop.permute.xlu0 %1341
      %1345 = vset.pattern.permute.xlu0 0
      %1346 = vperm.xlu0 %1345, %v1265
      %v1347 = vpop.permute.xlu0 %1346
      %1350 = vset.pattern.permute.xlu0 0
      %1351 = vperm.xlu0 %1350, %v1267
      %v1352 = vpop.permute.xlu0 %1351
      %v1354 = vmul.f32 %v1337, %v1330
      %v1355 = vmul.f32 %v1342, %v1331
      %v1356 = vmul.f32 %v1347, %v1332
      %v1357 = vmul.f32 %v1352, %v1333
      %1362 = vrot.lane.b32.xlu0 %v756, 112
      %v1363 = vpop.permute.xlu0 %1362
      %1364 = vrot.lane.b32.xlu0 %v761, 112
      %v1365 = vpop.permute.xlu0 %1364
      %1366 = vrot.lane.b32.xlu0 %v766, 112
      %v1367 = vpop.permute.xlu0 %1366
      %1368 = vrot.lane.b32.xlu0 %v771, 112
      %v1369 = vpop.permute.xlu0 %1368
      %v1375 = vsel %vm571, %v1293, 0
      %v1378 = vsel %vm571, %v1295, 0
      %v1381 = vsel %vm571, %v1297, 0
      %v1384 = vsel %vm571, %v1299, 0
      %1386 = vmatprep.subr.mxu0 0.0
      %1387 = vmatpush1.msra.mxu0 %v1363
      %1388 = vmatprep.subr.mxu0 0.0
      %1389 = vmatpush1.msra.mxu0 %v1365
      %1390 = vmatprep.subr.mxu0 0.0
      %1391 = vmatpush1.msra.mxu0 %v1367
      %1392 = vmatprep.subr.mxu0 0.0
      %1393 = vmatpush1.msra.mxu0 %v1369
      %1394 = vmatprep.subr.mxu0 0.0
      %1395 = vmatpush1.msra.mxu0 0.0
      %1396 = vmatprep.subr.mxu0 0.0
      %1397 = vmatpush1.msra.mxu0 0.0
      %1398 = vmatprep.subr.mxu0 0.0
      %1399 = vmatpush1.msra.mxu0 0.0
      %1400 = vmatprep.subr.mxu0 0.0
      %1401 = vmatpush1.msra.mxu0 0.0
      %1402 = vmatprep.subr.mxu0 0.0
      %1403 = vmatpush1.msra.mxu0 0.0
      %1404 = vmatprep.subr.mxu0 0.0
      %1405 = vmatpush1.msra.mxu0 0.0
      %1406 = vmatprep.subr.mxu0 0.0
      %1407 = vmatpush1.msra.mxu0 0.0
      %1408 = vmatprep.subr.mxu0 0.0
      %1409 = vmatpush1.msra.mxu0 0.0
      %1410 = vmatprep.subr.mxu0 0.0
      %1411 = vmatpush1.msra.mxu0 0.0
      %1412 = vmatprep.subr.mxu0 0.0
      %1413 = vmatpush1.msra.mxu0 0.0
      %1414 = vmatprep.subr.mxu0 0.0
      %1415 = vmatpush1.msra.mxu0 0.0
      %1416 = vmatprep.subr.mxu0 0.0
      %1417 = vmatpush1.msra.mxu0 0.0
      %1418 = vmatprep.subr.mxu0 0.0
      %1419 = vmatpush1.msra.mxu0 0.0
      %1420 = vmatprep.subr.mxu0 0.0
      %1421 = vmatpush1.msra.mxu0 0.0
      %1422 = vmatprep.subr.mxu0 0.0
      %1423 = vmatpush1.msra.mxu0 0.0
      %1424 = vmatprep.subr.mxu0 0.0
      %1425 = vmatpush1.msra.mxu0 0.0
      %1426 = vmatprep.subr.mxu0 0.0
      %1427 = vmatpush1.msra.mxu0 0.0
      %1428 = vmatprep.subr.mxu0 0.0
      %1429 = vmatpush1.msra.mxu0 0.0
      %1430 = vmatprep.subr.mxu0 0.0
      %1431 = vmatpush1.msra.mxu0 0.0
      %1432 = vmatprep.subr.mxu0 0.0
      %1433 = vmatpush1.msra.mxu0 0.0
      %1434 = vmatprep.subr.mxu0 0.0
      %1435 = vmatpush1.msra.mxu0 0.0
      %1436 = vmatprep.subr.mxu0 0.0
      %1437 = vmatpush1.msra.mxu0 0.0
      %1438 = vmatprep.subr.mxu0 0.0
      %1439 = vmatpush1.msra.mxu0 0.0
      %1440 = vmatprep.subr.mxu0 0.0
      %1441 = vmatpush1.msra.mxu0 0.0
      %1442 = vmatprep.subr.mxu0 0.0
      %1443 = vmatpush1.msra.mxu0 0.0
      %1444 = vmatprep.subr.mxu0 0.0
      %1445 = vmatpush1.msra.mxu0 0.0
      %1446 = vmatprep.subr.mxu0 0.0
      %1447 = vmatpush1.msra.mxu0 0.0
      %1448 = vmatprep.subr.mxu0 0.0
      %1449 = vmatpush1.msra.mxu0 0.0
      %1450 = vmatprep.mubr.f32.mxu0 0.0
      %1451 = vmatmul.mubr.f32.gmra.mrb[0].mxu0 %v1375
      %v1452 = vpop.f32.mrb[0].mxu0
      %v1453 = vadd.f32 0.0, %v1452
      %v1454 = vpop.f32.mrb[0].mxu0
      %1455 = vmatprep.mubr.f32.mxu0 0.0
      %1456 = vmatmul.mubr.f32.gmra.mrb[0].mxu0 %v1378
      %v1457 = vpop.f32.mrb[0].mxu0
      %v1458 = vadd.f32 0.0, %v1457
      %v1459 = vpop.f32.mrb[0].mxu0
      %1460 = vmatprep.mubr.f32.mxu0 0.0
      %1461 = vmatmul.mubr.f32.gmra.mrb[0].mxu0 %v1381
      %v1462 = vpop.f32.mrb[0].mxu0
      %v1463 = vadd.f32 0.0, %v1462
      %v1464 = vpop.f32.mrb[0].mxu0
      %1465 = vmatprep.mubr.f32.mxu0 0.0
      %1466 = vmatmul.mubr.f32.gmra.mrb[0].mxu0 %v1384
      %v1467 = vpop.f32.mrb[0].mxu0
      %v1468 = vadd.f32 0.0, %v1467
      %v1469 = vpop.f32.mrb[0].mxu0
      %1470 = vdwg.mxu0
      %v1471 = vadd.f32 %v1354, %v1453
      %v1472 = vadd.f32 %v1355, %v1458
      %v1473 = vadd.f32 %v1356, %v1463
      %v1474 = vadd.f32 %v1357, %v1468
      %1475 = vst.msk [vmem:[%s1329] sm:$0xff] %vm778, %v1471
      %1476 = vst.msk [vmem:[%s1329 + $0x8] sm:$0xff] %vm778, %v1472
      %1477 = vst.msk [vmem:[%s1329 + $0x10] sm:$0xff] %vm778, %v1473
      %1478 = vst.msk [vmem:[%s1329 + $0x18] sm:$0xff] %vm778, %v1474
      %1479 = vst.msk [vmem:[%s1235] sm:$0xff] %vm976, %v1252
      %1480 = vst.msk [vmem:[%s1235 + $0x8] sm:$0xff] %vm976, %v1253
      %1481 = vst.msk [vmem:[%s1235 + $0x10] sm:$0xff] %vm976, %v1254
      %1482 = vst.msk [vmem:[%s1235 + $0x18] sm:$0xff] %vm976, %v1255
      %p1483 = scmp.eq.s32.totalorder %s26, 2
      // Predicated region
      $region65: #{tpu_custom_call.1} parent=59 // pred_check
        %p1484 = pneg %p1483
      $region66: #{tpu_custom_call.1} parent=59 // pred_check_branch
        %1486 = sbr.rel (%p1484) target = $region68
      $region67: #{tpu_custom_call.1} parent=59 // pred_region
        %v1487 = vld [vmem:[#allocation4] sm:$0xff]
        %v1488 = vld [vmem:[#allocation4 + $0x8] sm:$0xff]
        %v1489 = vld [vmem:[#allocation4 + $0x10] sm:$0xff]
        %v1490 = vld [vmem:[#allocation4 + $0x18] sm:$0xff]
        %v1491 = vrcp.pop %v1487
        %v1492 = vrcp.pop %v1488
        %v1493 = vrcp.pop %v1489
        %v1494 = vrcp.pop %v1490
        %v1495 = vld [vmem:[#allocation5] sm:$0xff]
        %v1496 = vld [vmem:[#allocation5 + $0x8] sm:$0xff]
        %v1497 = vld [vmem:[#allocation5 + $0x10] sm:$0xff]
        %v1498 = vld [vmem:[#allocation5 + $0x18] sm:$0xff]
        %1500 = vset.pattern.permute.xlu0 0
        %1501 = vperm.xlu0 %1500, %v1491
        %v1502 = vpop.permute.xlu0 %1501
        %1505 = vset.pattern.permute.xlu0 0
        %1506 = vperm.xlu0 %1505, %v1492
        %v1507 = vpop.permute.xlu0 %1506
        %1510 = vset.pattern.permute.xlu0 0
        %1511 = vperm.xlu0 %1510, %v1493
        %v1512 = vpop.permute.xlu0 %1511
        %1515 = vset.pattern.permute.xlu0 0
        %1516 = vperm.xlu0 %1515, %v1494
        %v1517 = vpop.permute.xlu0 %1516
        %v1519 = vmul.f32 %v1495, %v1502
        %v1520 = vmul.f32 %v1496, %v1507
        %v1521 = vmul.f32 %v1497, %v1512
        %v1522 = vmul.f32 %v1498, %v1517
        %v1523 = vld [vmem:[%s6] sm:$0xff]
        %v1524 = vld [vmem:[%s6 + $0x8] sm:$0xff]
        %v1525 = vld [vmem:[%s1300] sm:$0xff]
        %v1526 = vld [vmem:[%s1300 + $0x8] sm:$0xff]
        %v1527 = vld [vmem:[%s1300 + $0x10] sm:$0xff]
        %v1528 = vld [vmem:[%s1300 + $0x18] sm:$0xff]
        %v1529 = vrcp.pop %v1525
        %v1530 = vrcp.pop %v1526
        %v1531 = vrcp.pop %v1527
        %v1532 = vrcp.pop %v1528
        %v1533 = vld [vmem:[%s1329] sm:$0xff]
        %v1534 = vld [vmem:[%s1329 + $0x8] sm:$0xff]
        %v1535 = vld [vmem:[%s1329 + $0x10] sm:$0xff]
        %v1536 = vld [vmem:[%s1329 + $0x18] sm:$0xff]
        %1538 = vset.pattern.permute.xlu0 0
        %1539 = vperm.xlu0 %1538, %v1529
        %v1540 = vpop.permute.xlu0 %1539
        %1543 = vset.pattern.permute.xlu0 0
        %1544 = vperm.xlu0 %1543, %v1530
        %v1545 = vpop.permute.xlu0 %1544
        %1548 = vset.pattern.permute.xlu0 0
        %1549 = vperm.xlu0 %1548, %v1531
        %v1550 = vpop.permute.xlu0 %1549
        %1553 = vset.pattern.permute.xlu0 0
        %1554 = vperm.xlu0 %1553, %v1532
        %v1555 = vpop.permute.xlu0 %1554
        %v1557 = vmul.f32 %v1533, %v1540
        %v1558 = vmul.f32 %v1534, %v1545
        %v1559 = vmul.f32 %v1535, %v1550
        %v1560 = vmul.f32 %v1536, %v1555
        %v1561 = vld [vmem:[%s6 + $0x10] sm:$0xff]
        %v1562 = vld [vmem:[%s6 + $0x18] sm:$0xff]
        %v1564 = vsel %vm778, %v1557, 0
        %v1567 = vsel %vm778, %v1558, 0
        %v1570 = vsel %vm778, %v1559, 0
        %v1573 = vsel %vm778, %v1560, 0
        %1575 = vmatprep.subr.mxu0 0.0
        %1576 = vmatpush1.msra.mxu0 %v1561
        %1577 = vmatprep.subr.mxu0 0.0
        %1578 = vmatpush1.msra.mxu0 %v1562
        %1579 = vmatprep.subr.mxu0 0.0
        %1580 = vmatpush1.msra.mxu0 0.0
        %1581 = vmatprep.subr.mxu0 0.0
        %1582 = vmatpush1.msra.mxu0 0.0
        %1583 = vmatprep.subr.mxu0 0.0
        %1584 = vmatpush1.msra.mxu0 0.0
        %1585 = vmatprep.subr.mxu0 0.0
        %1586 = vmatpush1.msra.mxu0 0.0
        %1587 = vmatprep.subr.mxu0 0.0
        %1588 = vmatpush1.msra.mxu0 0.0
        %1589 = vmatprep.subr.mxu0 0.0
        %1590 = vmatpush1.msra.mxu0 0.0
        %1591 = vmatprep.subr.mxu0 0.0
        %1592 = vmatpush1.msra.mxu0 0.0
        %1593 = vmatprep.subr.mxu0 0.0
        %1594 = vmatpush1.msra.mxu0 0.0
        %1595 = vmatprep.subr.mxu0 0.0
        %1596 = vmatpush1.msra.mxu0 0.0
        %1597 = vmatprep.subr.mxu0 0.0
        %1598 = vmatpush1.msra.mxu0 0.0
        %1599 = vmatprep.subr.mxu0 0.0
        %1600 = vmatpush1.msra.mxu0 0.0
        %1601 = vmatprep.subr.mxu0 0.0
        %1602 = vmatpush1.msra.mxu0 0.0
        %1603 = vmatprep.subr.mxu0 0.0
        %1604 = vmatpush1.msra.mxu0 0.0
        %1605 = vmatprep.subr.mxu0 0.0
        %1606 = vmatpush1.msra.mxu0 0.0
        %1607 = vmatprep.subr.mxu0 0.0
        %1608 = vmatpush1.msra.mxu0 0.0
        %1609 = vmatprep.subr.mxu0 0.0
        %1610 = vmatpush1.msra.mxu0 0.0
        %1611 = vmatprep.subr.mxu0 0.0
        %1612 = vmatpush1.msra.mxu0 0.0
        %1613 = vmatprep.subr.mxu0 0.0
        %1614 = vmatpush1.msra.mxu0 0.0
        %1615 = vmatprep.subr.mxu0 0.0
        %1616 = vmatpush1.msra.mxu0 0.0
        %1617 = vmatprep.subr.mxu0 0.0
        %1618 = vmatpush1.msra.mxu0 0.0
        %1619 = vmatprep.subr.mxu0 0.0
        %1620 = vmatpush1.msra.mxu0 0.0
        %1621 = vmatprep.subr.mxu0 0.0
        %1622 = vmatpush1.msra.mxu0 0.0
        %1623 = vmatprep.subr.mxu0 0.0
        %1624 = vmatpush1.msra.mxu0 0.0
        %1625 = vmatprep.subr.mxu0 0.0
        %1626 = vmatpush1.msra.mxu0 0.0
        %1627 = vmatprep.subr.mxu0 0.0
        %1628 = vmatpush1.msra.mxu0 0.0
        %1629 = vmatprep.subr.mxu0 0.0
        %1630 = vmatpush1.msra.mxu0 0.0
        %1631 = vmatprep.subr.mxu0 0.0
        %1632 = vmatpush1.msra.mxu0 0.0
        %1633 = vmatprep.subr.mxu0 0.0
        %1634 = vmatpush1.msra.mxu0 0.0
        %1635 = vmatprep.subr.mxu0 0.0
        %1636 = vmatpush1.msra.mxu0 0.0
        %1637 = vmatprep.subr.mxu0 0.0
        %1638 = vmatpush1.msra.mxu0 0.0
        %1639 = vmatprep.mubr.f32.mxu0 0.0
        %1640 = vmatmul.mubr.f32.gmra.mrb[0].mxu0 %v1564
        %v1641 = vpop.f32.mrb[0].mxu0
        %v1642 = vadd.f32 0.0, %v1641
        %v1643 = vpop.f32.mrb[0].mxu0
        %1644 = vmatprep.mubr.f32.mxu0 0.0
        %1645 = vmatmul.mubr.f32.gmra.mrb[0].mxu0 %v1567
        %v1646 = vpop.f32.mrb[0].mxu0
        %v1647 = vadd.f32 0.0, %v1646
        %v1648 = vpop.f32.mrb[0].mxu0
        %1649 = vmatprep.mubr.f32.mxu0 0.0
        %1650 = vmatmul.mubr.f32.gmra.mrb[0].mxu0 %v1570
        %v1651 = vpop.f32.mrb[0].mxu0
        %v1652 = vadd.f32 0.0, %v1651
        %v1653 = vpop.f32.mrb[0].mxu0
        %1654 = vmatprep.mubr.f32.mxu0 0.0
        %1655 = vmatmul.mubr.f32.gmra.mrb[0].mxu0 %v1573
        %v1656 = vpop.f32.mrb[0].mxu0
        %v1657 = vadd.f32 0.0, %v1656
        %v1658 = vpop.f32.mrb[0].mxu0
        %1659 = vdwg.mxu0
        %v1661 = vsel %vm778, %v1519, 0
        %v1664 = vsel %vm778, %v1520, 0
        %v1667 = vsel %vm778, %v1521, 0
        %v1670 = vsel %vm778, %v1522, 0
        %1672 = vmatprep.subr.mxu0 0.0
        %1673 = vmatpush1.msra.mxu0 %v1523
        %1674 = vmatprep.subr.mxu0 0.0
        %1675 = vmatpush1.msra.mxu0 %v1524
        %1676 = vmatprep.subr.mxu0 0.0
        %1677 = vmatpush1.msra.mxu0 0.0
        %1678 = vmatprep.subr.mxu0 0.0
        %1679 = vmatpush1.msra.mxu0 0.0
        %1680 = vmatprep.subr.mxu0 0.0
        %1681 = vmatpush1.msra.mxu0 0.0
        %1682 = vmatprep.subr.mxu0 0.0
        %1683 = vmatpush1.msra.mxu0 0.0
        %1684 = vmatprep.subr.mxu0 0.0
        %1685 = vmatpush1.msra.mxu0 0.0
        %1686 = vmatprep.subr.mxu0 0.0
        %1687 = vmatpush1.msra.mxu0 0.0
        %1688 = vmatprep.subr.mxu0 0.0
        %1689 = vmatpush1.msra.mxu0 0.0
        %1690 = vmatprep.subr.mxu0 0.0
        %1691 = vmatpush1.msra.mxu0 0.0
        %1692 = vmatprep.subr.mxu0 0.0
        %1693 = vmatpush1.msra.mxu0 0.0
        %1694 = vmatprep.subr.mxu0 0.0
        %1695 = vmatpush1.msra.mxu0 0.0
        %1696 = vmatprep.subr.mxu0 0.0
        %1697 = vmatpush1.msra.mxu0 0.0
        %1698 = vmatprep.subr.mxu0 0.0
        %1699 = vmatpush1.msra.mxu0 0.0
        %1700 = vmatprep.subr.mxu0 0.0
        %1701 = vmatpush1.msra.mxu0 0.0
        %1702 = vmatprep.subr.mxu0 0.0
        %1703 = vmatpush1.msra.mxu0 0.0
        %1704 = vmatprep.subr.mxu0 0.0
        %1705 = vmatpush1.msra.mxu0 0.0
        %1706 = vmatprep.subr.mxu0 0.0
        %1707 = vmatpush1.msra.mxu0 0.0
        %1708 = vmatprep.subr.mxu0 0.0
        %1709 = vmatpush1.msra.mxu0 0.0
        %1710 = vmatprep.subr.mxu0 0.0
        %1711 = vmatpush1.msra.mxu0 0.0
        %1712 = vmatprep.subr.mxu0 0.0
        %1713 = vmatpush1.msra.mxu0 0.0
        %1714 = vmatprep.subr.mxu0 0.0
        %1715 = vmatpush1.msra.mxu0 0.0
        %1716 = vmatprep.subr.mxu0 0.0
        %1717 = vmatpush1.msra.mxu0 0.0
        %1718 = vmatprep.subr.mxu0 0.0
        %1719 = vmatpush1.msra.mxu0 0.0
        %1720 = vmatprep.subr.mxu0 0.0
        %1721 = vmatpush1.msra.mxu0 0.0
        %1722 = vmatprep.subr.mxu0 0.0
        %1723 = vmatpush1.msra.mxu0 0.0
        %1724 = vmatprep.subr.mxu0 0.0
        %1725 = vmatpush1.msra.mxu0 0.0
        %1726 = vmatprep.subr.mxu0 0.0
        %1727 = vmatpush1.msra.mxu0 0.0
        %1728 = vmatprep.subr.mxu0 0.0
        %1729 = vmatpush1.msra.mxu0 0.0
        %1730 = vmatprep.subr.mxu0 0.0
        %1731 = vmatpush1.msra.mxu0 0.0
        %1732 = vmatprep.subr.mxu0 0.0
        %1733 = vmatpush1.msra.mxu0 0.0
        %1734 = vmatprep.subr.mxu0 0.0
        %1735 = vmatpush1.msra.mxu0 0.0
        %1736 = vmatprep.mubr.f32.mxu0 0.0
        %1737 = vmatmul.mubr.f32.gmra.mrb[0].mxu0 %v1661
        %v1738 = vpop.f32.mrb[0].mxu0
        %v1739 = vadd.f32 %v1642, %v1738
        %v1740 = vpop.f32.mrb[0].mxu0
        %1741 = vmatprep.mubr.f32.mxu0 0.0
        %1742 = vmatmul.mubr.f32.gmra.mrb[0].mxu0 %v1664
        %v1743 = vpop.f32.mrb[0].mxu0
        %v1744 = vadd.f32 %v1647, %v1743
        %v1745 = vpop.f32.mrb[0].mxu0
        %1746 = vmatprep.mubr.f32.mxu0 0.0
        %1747 = vmatmul.mubr.f32.gmra.mrb[0].mxu0 %v1667
        %v1748 = vpop.f32.mrb[0].mxu0
        %v1749 = vadd.f32 %v1652, %v1748
        %v1750 = vpop.f32.mrb[0].mxu0
        %1751 = vmatprep.mubr.f32.mxu0 0.0
        %1752 = vmatmul.mubr.f32.gmra.mrb[0].mxu0 %v1670
        %v1753 = vpop.f32.mrb[0].mxu0
        %v1754 = vadd.f32 %v1657, %v1753
        %v1755 = vpop.f32.mrb[0].mxu0
        %1756 = vdwg.mxu0
        %v1757 = vld [vmem:[%s7] sm:$0x1]
        %v1759 = vlaneseq
        %v1760 = vshrl.u32 %v1759, 7
        %v1761 = vsub.s32 0, %v1760
        %v1762 = vrot.slane %v1757, %v1761
        %v1764 = vadd.f32 %v1739, %v1762
        %v1765 = vadd.f32 %v1744, %v1762
        %v1766 = vadd.f32 %v1749, %v1762
        %v1767 = vadd.f32 %v1754, %v1762
        %v1768 = vld [vmem:[%s399] sm:$0xff]
        %v1769 = vld [vmem:[%s399 + $0x8] sm:$0xff]
        %v1770 = vld [vmem:[%s399 + $0x10] sm:$0xff]
        %v1771 = vld [vmem:[%s399 + $0x18] sm:$0xff]
        %v1772 = vadd.f32 %v1764, %v1768
        %v1773 = vadd.f32 %v1765, %v1769
        %v1774 = vadd.f32 %v1766, %v1770
        %v1775 = vadd.f32 %v1767, %v1771
        %v1776 = vsel %vm571, %v1772, 0.0
        %1777 = vadd.xlane.f32.xlu0 %v1776
        %v1778 = vpop.xlane.xlu0 %1777
        %v1779 = vsel %vm571, %v1773, 0.0
        %1780 = vadd.xlane.f32.xlu0 %v1779
        %v1781 = vpop.xlane.xlu0 %1780
        %v1782 = vsel %vm571, %v1774, 0.0
        %1783 = vadd.xlane.f32.xlu0 %v1782
        %v1784 = vpop.xlane.xlu0 %1783
        %v1785 = vsel %vm571, %v1775, 0.0
        %1786 = vadd.xlane.f32.xlu0 %v1785
        %v1787 = vpop.xlane.xlu0 %1786
        %v1788 = vrcp.pop 32.0
        %v1789 = vmul.f32 %v1778, %v1788
        %v1790 = vmul.f32 %v1781, %v1788
        %v1791 = vmul.f32 %v1784, %v1788
        %v1792 = vmul.f32 %v1787, %v1788
        %v1793 = vsub.f32 %v1772, %v1789
        %v1794 = vsub.f32 %v1773, %v1790
        %v1795 = vsub.f32 %v1774, %v1791
        %v1796 = vsub.f32 %v1775, %v1792
        %v1797 = vmul.f32 %v1793, %v1793
        %v1798 = vmul.f32 %v1794, %v1794
        %v1799 = vmul.f32 %v1795, %v1795
        %v1800 = vmul.f32 %v1796, %v1796
        %v1801 = vsel %vm571, %v1797, 0.0
        %1802 = vadd.xlane.f32.xlu0 %v1801
        %v1803 = vpop.xlane.xlu0 %1802
        %v1804 = vsel %vm571, %v1798, 0.0
        %1805 = vadd.xlane.f32.xlu0 %v1804
        %v1806 = vpop.xlane.xlu0 %1805
        %v1807 = vsel %vm571, %v1799, 0.0
        %1808 = vadd.xlane.f32.xlu0 %v1807
        %v1809 = vpop.xlane.xlu0 %1808
        %v1810 = vsel %vm571, %v1800, 0.0
        %1811 = vadd.xlane.f32.xlu0 %v1810
        %v1812 = vpop.xlane.xlu0 %1811
        %v1813 = vmul.f32 %v1803, %v1788
        %v1814 = vmul.f32 %v1806, %v1788
        %v1815 = vmul.f32 %v1809, %v1788
        %v1816 = vmul.f32 %v1812, %v1788
        %v1817 = vadd.f32 %v1813, 1e-05
        %v1818 = vadd.f32 %v1814, 1e-05
        %v1819 = vadd.f32 %v1815, 1e-05
        %v1820 = vadd.f32 %v1816, 1e-05
        %v1821 = vrsqrt.pop %v1817
        %v1822 = vrsqrt.pop %v1818
        %v1823 = vrsqrt.pop %v1819
        %v1824 = vrsqrt.pop %v1820
        %v1825 = vmul.f32 %v1793, %v1821
        %v1826 = vmul.f32 %v1794, %v1822
        %v1827 = vmul.f32 %v1795, %v1823
        %v1828 = vmul.f32 %v1796, %v1824
        %v1829 = vld [vmem:[%s8] sm:$0x1]
        %v1831 = vlaneseq
        %v1832 = vshrl.u32 %v1831, 7
        %v1833 = vsub.s32 0, %v1832
        %v1834 = vrot.slane %v1829, %v1833
        %v1836 = vmul.f32 %v1825, %v1834
        %v1837 = vmul.f32 %v1826, %v1834
        %v1838 = vmul.f32 %v1827, %v1834
        %v1839 = vmul.f32 %v1828, %v1834
        %v1840 = vld [vmem:[%s9] sm:$0x1]
        %v1842 = vlaneseq
        %v1843 = vshrl.u32 %v1842, 7
        %v1844 = vsub.s32 0, %v1843
        %v1845 = vrot.slane %v1840, %v1844
        %v1847 = vadd.f32 %v1836, %v1845
        %v1848 = vadd.f32 %v1837, %v1845
        %v1849 = vadd.f32 %v1838, %v1845
        %v1850 = vadd.f32 %v1839, %v1845
        %1851 = vst.msk [vmem:[%s417] sm:$0xff] %vm571, %v1847
        %1852 = vst.msk [vmem:[%s417 + $0x8] sm:$0xff] %vm571, %v1848
        %1853 = vst.msk [vmem:[%s417 + $0x10] sm:$0xff] %vm571, %v1849
        %1854 = vst.msk [vmem:[%s417 + $0x18] sm:$0xff] %vm571, %v1850
      $region68: #{tpu_custom_call.1} parent=59 // pred_fallthru
        _
      %s1855 = smul.u32 4, %s25
      %p1856 = scmp.lt.s32.totalorder %s1855, 7
      %s1857 = scalar_select %p1856, %s1855, 7
      %s1858 = smul.addr %s1857, 8
      %s1859 = scalar_lea.vmem %s10, %s1858
      // Predicated region
      $region69: #{tpu_custom_call.1} parent=59 // pred_check
        %p1860 = pneg %p276
      $region70: #{tpu_custom_call.1} parent=59 // pred_check_branch
        %1862 = sbr.rel (%p1860) target = $region72
      $region71: #{tpu_custom_call.1} parent=59 // pred_region
        %s1863 = smul.u32 4, %s25
      $region72: #{tpu_custom_call.1} parent=59 // pred_fallthru
        _
    $region60: #{tpu_custom_call.1} parent=5 // pred_fallthru
      _
    %p1864 = scmp.le.s32.totalorder 2, %s16
    // Predicated region
    $region73: #{tpu_custom_call.1} parent=5 // pred_check
      %p1865 = pneg %p1864
    $region74: #{tpu_custom_call.1} parent=5 // pred_check_branch
      %1867 = sbr.rel (%p1865) target = $region76
    $region75: #{tpu_custom_call.1} parent=5 // pred_region
      %s1868 = ssub.s32 %s16, 2
      // Predicated region
      $region77: #{tpu_custom_call.1} parent=75 // pred_check
        %p1869 = pneg %p282
      $region78: #{tpu_custom_call.1} parent=75 // pred_check_branch
        %1871 = sbr.rel (%p1869) target = $region80
      $region79: #{tpu_custom_call.1} parent=75 // pred_region
        %s1872 = smul.u32 4, %s27
        %p1873 = scmp.lt.s32.totalorder %s1872, 7
        %s1874 = scalar_select %p1873, %s1872, 7
        %s1875 = smul.addr %s1874, 8
        %s1876 = scalar_lea.vmem %s10, %s1875
      $region80: #{tpu_custom_call.1} parent=75 // pred_fallthru
        _
    $region76: #{tpu_custom_call.1} parent=5 // pred_fallthru
      _
  $region6: #{tpu_custom_call.1} parent=0 // loop_footer
    %s20 = sadd.s32 1, %s16
  $region7: #{tpu_custom_call.1} parent=0 // loop_footer_branch
    %15 = sbr.rel target = $region3
  $region8: #{tpu_custom_call.1} parent=0 // loop_exit
    _

</llo_original>
